<compile_context>
chip_gen: v7x
topology: tpu7x:2x2x1
jax: 0.10.0
libtpu: 0.0.40
codegen_flags: <defaults>
</compile_context>

<pallas_src>
import math

import jax
import jax.numpy as jnp
from jax.experimental import pallas as pl
from jax.experimental.pallas import tpu as pltpu  # noqa: F401  (TPU backend)

# ---------------- config (small, consistent with the module's forward) -------
VOCAB = 128
B, S, H = 2, 8, 32          # batch, seq, hidden_size
BS = B * S
N_HEADS, D_HEAD = 2, 16     # H = N_HEADS * D_HEAD
INTERMEDIATE = 64
N_LAYERS = 2
NUM_CLASSES = 3
FC_PAD = 128                # lane-dense classifier output, sliced to NUM_CLASSES in wrapper
LANE = 128
LN_EPS = 1e-12
ATTN_SCALE = 1.0 / math.sqrt(D_HEAD)


# ---------------- packed-slab layout (static offsets, shared by init & kernel)
def _build_offsets():
    w_off, r = {}, 0
    for l in range(N_LAYERS):
        w_off[f"wqkv{l}"] = r; r += H             # (H, 3H)
        w_off[f"wo{l}"]   = r; r += H             # (H, H)
        w_off[f"w1{l}"]   = r; r += H             # (H, I)
        w_off[f"w2{l}"]   = r; r += INTERMEDIATE  # (I, H)
    w_off["pooler"] = r; r += H                   # (H, H)
    w_off["fc"]     = r; r += H                   # (H, FC_PAD)
    w_rows = r

    b_off, r = {}, 0
    for name in ("emb_g", "emb_b"):
        b_off[name] = r; r += 1
    for l in range(N_LAYERS):
        for name in ("bqkv", "bo", "ln1_g", "ln1_b", "b1", "b2", "ln2_g", "ln2_b"):
            b_off[f"{name}{l}"] = r; r += 1
    for name in ("pooler_b", "fc_b"):
        b_off[name] = r; r += 1
    b_rows = r
    return w_off, w_rows, b_off, b_rows


W_OFF, W_ROWS, B_OFF, B_ROWS = _build_offsets()   # 384 weight rows, 20 bias rows


# ---------------- in-kernel helpers -------------------------------------------
def _ln(x, g, b):
    mu = jnp.mean(x, axis=-1, keepdims=True)
    var = jnp.mean(jnp.square(x - mu), axis=-1, keepdims=True)
    return (x - mu) * jax.lax.rsqrt(var + LN_EPS) * g + b


def _mm(a, w_bf16):
    # Activation cast to bf16 on the fly; weights are already bf16; f32 accumulate.
    return jnp.dot(a.astype(jnp.bfloat16), w_bf16, preferred_element_type=jnp.float32)


def _gelu(y):
    # tanh-approximate GELU, elementwise math in f32.
    # TODO(synk): HF BERT's default activation is exact erf GELU; tanh approx differs slightly.
    return 0.5 * y * (1.0 + jnp.tanh(0.7978845608028654 * (y + 0.044715 * y * y * y)))


# ---------------- the fused kernel --------------------------------------------
def _fused_bert_kernel(x_ref, mask_ref, w_ref, b_ref, o_ref):
    # Static slices of the packed slabs (all row offsets are multiples of 32,
    # all lane slices start at 0 -> no lane shuffles).
    def W(name, rows, cols):
        r0 = W_OFF[name]
        return w_ref[r0:r0 + rows, :cols]          # bf16

    def V(name, cols):
        r0 = B_OFF[name]
        return b_ref[r0:r0 + 1, :cols]             # f32, broadcasts over rows

    # Embedding layernorm.
    h = _ln(x_ref[...], V("emb_g", H), V("emb_b", H))        # (BS, H) f32
    mask = mask_ref[...]                                       # (BS, BS) additive mask

    for l in range(N_LAYERS):                                  # static unroll
        # Fused QKV projection: one MXU push of (BS, H) @ (H, 3H).
        qkv = _mm(h, W(f"wqkv{l}", H, 3 * H)) + V(f"bqkv{l}", 3 * H)   # (BS, 3H) f32

        # Attention with batch dim folded into the score matmul; per head:
        # one (BS,BS) score matmul + one (BS,BS)@(BS,dH) PV matmul.  The
        # block-diagonal mask (built in the wrapper) keeps batches separate.
        ctx_heads = []
        for hh in range(N_HEADS):
            c0 = hh * D_HEAD
            qh = qkv[:, c0:c0 + D_HEAD].astype(jnp.bfloat16)                  # (BS, dH)
            kh = qkv[:, H + c0:H + c0 + D_HEAD].astype(jnp.bfloat16)
            vh = qkv[:, 2 * H + c0:2 * H + c0 + D_HEAD].astype(jnp.bfloat16)
            # q @ k^T without an explicit transpose op.
            sc = jax.lax.dot_general(qh, kh, (((1,), (1,)), ((), ())),
                                     preferred_element_type=jnp.float32)
            sc = sc * ATTN_SCALE + mask                                       # (BS, BS) f32
            # No max-subtraction: scores are tiny, masked entries (-1e4) underflow to 0.
            p = jnp.exp(sc)
            p = p * pl.reciprocal(jnp.sum(p, axis=-1, keepdims=True), approx=True)
            ctx_heads.append(jnp.dot(p.astype(jnp.bfloat16), vh,
                                     preferred_element_type=jnp.float32))     # (BS, dH)
        ctx = jnp.concatenate(ctx_heads, axis=-1)                             # (BS, H)

        # Single output projection per layer.
        attn_out = _mm(ctx, W(f"wo{l}", H, H)) + V(f"bo{l}", H)

        h1 = _ln(attn_out + h, V(f"ln1_g{l}", H), V(f"ln1_b{l}", H))
        y = _gelu(_mm(h1, W(f"w1{l}", H, INTERMEDIATE)) + V(f"b1{l}", INTERMEDIATE))
        ffn = _mm(y, W(f"w2{l}", INTERMEDIATE, H)) + V(f"b2{l}", H)
        h = _ln(ffn + h1, V(f"ln2_g{l}", H), V(f"ln2_b{l}", H))

    # BERT pooler: tanh(h @ Wp + bp).  Applied to every token (single tiny MXU
    # pass); the wrapper keeps only the [CLS] rows, which is equivalent.
    pooled = jnp.tanh(_mm(h, W("pooler", H, H)) + V("pooler_b", H))           # (BS, H)
    # nn.Dropout(0.1) -> identity in eval mode (inference semantics).
    # Classifier fc, lane-dense padded output (BS, 128).
    o_ref[...] = _mm(pooled, W("fc", H, FC_PAD)) + V("fc_b", FC_PAD)


def _vmem_spec(shape):
    nd = len(shape)
    return pl.BlockSpec(shape, lambda: (0,) * nd)


# ---------------- deterministic parameter init (packs the slabs) --------------
def init_params(key):
    keys = iter(jax.random.split(key, 64))

    def w(shape, scale=0.02):
        return scale * jax.random.normal(next(keys), shape, jnp.float32)

    def zeros(shape):
        return jnp.zeros(shape, jnp.float32)

    def ones(shape):
        return jnp.ones(shape, jnp.float32)

    def pad_lanes(a):
        return jnp.pad(a, ((0, 0), (0, LANE - a.shape[1])))

    # Embeddings (used by JAX glue outside the kernel).
    word_emb = w((VOCAB, H))
    pos_emb = w((S, H))
    type_emb = w((2, H))

    # Weight slab rows, in the exact order of W_OFF.
    w_blocks = []
    # Bias/gain slab rows, in the exact order of B_OFF.
    b_blocks = [ones((1, H)), zeros((1, H))]                      # emb_g, emb_b
    for _ in range(N_LAYERS):
        w_blocks += [w((H, 3 * H)), w((H, H)), w((H, INTERMEDIATE)), w((INTERMEDIATE, H))]
        b_blocks += [zeros((1, 3 * H)), zeros((1, H)),             # bqkv, bo
                     ones((1, H)), zeros((1, H)),                  # ln1_g, ln1_b
                     zeros((1, INTERMEDIATE)), zeros((1, H)),      # b1, b2
                     ones((1, H)), zeros((1, H))]                  # ln2_g, ln2_b
    w_blocks += [w((H, H)),                                        # pooler_w
                 jnp.pad(w((H, NUM_CLASSES)),
                         ((0, 0), (0, FC_PAD - NUM_CLASSES)))]     # fc_w, lane-padded
    b_blocks += [zeros((1, H)), zeros((1, FC_PAD))]                # pooler_b, fc_b

    w_slab = jnp.concatenate([pad_lanes(a) for a in w_blocks], axis=0).astype(jnp.bfloat16)
    b_slab = jnp.concatenate([pad_lanes(a) for a in b_blocks], axis=0)

    assert w_slab.shape == (W_ROWS, LANE)
    assert b_slab.shape == (B_ROWS, LANE)

    return dict(word_emb=word_emb, pos_emb=pos_emb, type_emb=type_emb,
                w_slab=w_slab, b_slab=b_slab)


# ---------------- forward pass (mirrors BERTClassifier.forward) ---------------
def bert_classifier_forward(params, input_ids, attention_mask):
    # Embeddings (token gather + adds are tiny JAX glue feeding the fused kernel).
    emb = (params["word_emb"][input_ids]
           + params["pos_emb"][None, :, :]
           + params["type_emb"][0][None, None, :])
    x = emb.reshape(BS, H).astype(jnp.float32)

    # Combined additive mask for the batch-merged (BS, BS) score matmul:
    # 0 where (same batch AND key attended), -1e4 elsewhere (HF-style padding
    # mask on the key axis + block-diagonal batch separation).
    am = attention_mask.astype(jnp.float32)                       # (B, S)
    batch_ids = jnp.repeat(jnp.arange(B), S)                      # (BS,)
    same_batch = (batch_ids[:, None] == batch_ids[None, :]).astype(jnp.float32)
    key_ok = am.reshape(1, BS)
    mask_add = (1.0 - same_batch * key_ok) * -10000.0             # (BS, BS)

    inputs = (x, mask_add, params["w_slab"], params["b_slab"])

    out = pl.pallas_call(
        _fused_bert_kernel,
        out_shape=jax.ShapeDtypeStruct((BS, FC_PAD), jnp.float32),
        in_specs=[_vmem_spec(a.shape) for a in inputs],
        out_specs=_vmem_spec((BS, FC_PAD)),
    )(*inputs)

    # Keep only the [CLS] token's logits and the real NUM_CLASSES lanes.
    return out.reshape(B, S, FC_PAD)[:, 0, :NUM_CLASSES]


# TODO(synk): tokenizer / tokenize() is host-side text preprocessing with no
# Pallas equivalent; inputs are provided as integer token ids directly.

if __name__ == "__main__":
    key = jax.random.PRNGKey(0)
    k_ids, k_params = jax.random.split(key, 2)

    input_ids = jax.random.randint(k_ids, (B, S), 0, VOCAB, dtype=jnp.int32)
    attention_mask = jnp.concatenate(
        [jnp.ones((B, S - 2), jnp.int32), jnp.zeros((B, 2), jnp.int32)], axis=1)

    params = init_params(k_params)

    logits = jax.jit(bert_classifier_forward)(params, input_ids, attention_mask)
    jax.block_until_ready(logits)

    assert logits.shape == (B, NUM_CLASSES)
    assert logits.dtype == jnp.float32
    print("KERNEL_OK")
</pallas_src>

<mosaic_0001>
module attributes {stable_mosaic.version = 11 : i64} {
  func.func @_fused_bert_kernel(%arg0: memref<16x32xf32, #tpu.memory_space<vmem>>, %arg1: memref<16x16xf32, #tpu.memory_space<vmem>>, %arg2: memref<384x128xbf16, #tpu.memory_space<vmem>>, %arg3: memref<20x128xf32, #tpu.memory_space<vmem>>, %arg4: memref<16x128xf32, #tpu.memory_space<vmem>>) attributes {dimension_semantics = [], scalar_prefetch = 0 : i64, scratch_operands = 0 : i64, tpu.core_type = #tpu.core_type<tc>} {
    %c0 = arith.constant 0 : index
    %c0_0 = arith.constant 0 : index
    %0 = vector.load %arg0[%c0, %c0_0] : memref<16x32xf32, #tpu.memory_space<vmem>>, vector<16x32xf32>
    %c0_1 = arith.constant 0 : index
    %c0_2 = arith.constant 0 : index
    %1 = vector.load %arg3[%c0_1, %c0_2] : memref<20x128xf32, #tpu.memory_space<vmem>>, vector<1x32xf32>
    %c1 = arith.constant 1 : index
    %c0_3 = arith.constant 0 : index
    %2 = vector.load %arg3[%c1, %c0_3] : memref<20x128xf32, #tpu.memory_space<vmem>>, vector<1x32xf32>
    %cst = arith.constant dense<0.000000e+00> : vector<16xf32>
    %3 = vector.multi_reduction <add>, %0, %cst [1] : vector<16x32xf32> to vector<16xf32>
    %4 = vector.shape_cast %3 : vector<16xf32> to vector<16x1xf32>
    %cst_4 = arith.constant 3.200000e+01 : f32
    %5 = vector.broadcast %cst_4 : f32 to vector<16x1xf32>
    %6 = arith.divf %4, %5 : vector<16x1xf32>
    %7 = vector.broadcast %6 : vector<16x1xf32> to vector<16x32xf32>
    %8 = arith.subf %0, %7 : vector<16x32xf32>
    %9 = arith.mulf %8, %8 : vector<16x32xf32>
    %cst_5 = arith.constant dense<0.000000e+00> : vector<16xf32>
    %10 = vector.multi_reduction <add>, %9, %cst_5 [1] : vector<16x32xf32> to vector<16xf32>
    %11 = vector.shape_cast %10 : vector<16xf32> to vector<16x1xf32>
    %cst_6 = arith.constant 3.200000e+01 : f32
    %12 = vector.broadcast %cst_6 : f32 to vector<16x1xf32>
    %13 = arith.divf %11, %12 : vector<16x1xf32>
    %14 = vector.broadcast %6 : vector<16x1xf32> to vector<16x32xf32>
    %15 = arith.subf %0, %14 : vector<16x32xf32>
    %cst_7 = arith.constant 9.99999996E-13 : f32
    %16 = vector.broadcast %cst_7 : f32 to vector<16x1xf32>
    %17 = arith.addf %13, %16 : vector<16x1xf32>
    %18 = math.rsqrt %17 : vector<16x1xf32>
    %19 = vector.broadcast %18 : vector<16x1xf32> to vector<16x32xf32>
    %20 = arith.mulf %15, %19 : vector<16x32xf32>
    %21 = vector.broadcast %1 : vector<1x32xf32> to vector<16x32xf32>
    %22 = arith.mulf %20, %21 : vector<16x32xf32>
    %23 = vector.broadcast %2 : vector<1x32xf32> to vector<16x32xf32>
    %24 = arith.addf %22, %23 : vector<16x32xf32>
    %c0_8 = arith.constant 0 : index
    %c0_9 = arith.constant 0 : index
    %25 = vector.load %arg1[%c0_8, %c0_9] : memref<16x16xf32, #tpu.memory_space<vmem>>, vector<16x16xf32>
    %c0_10 = arith.constant 0 : index
    %c0_11 = arith.constant 0 : index
    %26 = vector.load %arg2[%c0_10, %c0_11] : memref<384x128xbf16, #tpu.memory_space<vmem>>, vector<32x96xbf16>
    %27 = arith.truncf %24 : vector<16x32xf32> to vector<16x32xbf16>
    %cst_12 = arith.constant dense<0.000000e+00> : vector<16x96xf32>
    %28 = tpu.matmul %27, %26, %cst_12 {dimension_numbers = #tpu.dot_dimension_numbers<[1], [0], [0], [1], [0, 0, 1, 1], [], []>} : vector<16x32xbf16>, vector<32x96xbf16>, vector<16x96xf32> -> vector<16x96xf32>
    %c2 = arith.constant 2 : index
    %c0_13 = arith.constant 0 : index
    %29 = vector.load %arg3[%c2, %c0_13] : memref<20x128xf32, #tpu.memory_space<vmem>>, vector<1x96xf32>
    %30 = vector.broadcast %29 : vector<1x96xf32> to vector<16x96xf32>
    %31 = arith.addf %28, %30 : vector<16x96xf32>
    %32 = vector.extract_strided_slice %31 {offsets = [0, 0], sizes = [16, 16], strides = [1, 1]} : vector<16x96xf32> to vector<16x16xf32>
    %33 = arith.truncf %32 : vector<16x16xf32> to vector<16x16xbf16>
    %34 = vector.extract_strided_slice %31 {offsets = [0, 32], sizes = [16, 16], strides = [1, 1]} : vector<16x96xf32> to vector<16x16xf32>
    %35 = arith.truncf %34 : vector<16x16xf32> to vector<16x16xbf16>
    %36 = vector.extract_strided_slice %31 {offsets = [0, 64], sizes = [16, 16], strides = [1, 1]} : vector<16x96xf32> to vector<16x16xf32>
    %37 = arith.truncf %36 : vector<16x16xf32> to vector<16x16xbf16>
    %cst_14 = arith.constant dense<0.000000e+00> : vector<16x16xf32>
    %38 = tpu.matmul %33, %35, %cst_14 {dimension_numbers = #tpu.dot_dimension_numbers<[1], [1], [0], [0], [0, 0, 1, 0], [], []>} : vector<16x16xbf16>, vector<16x16xbf16>, vector<16x16xf32> -> vector<16x16xf32>
    %cst_15 = arith.constant 2.500000e-01 : f32
    %39 = vector.broadcast %cst_15 : f32 to vector<16x16xf32>
    %40 = arith.mulf %38, %39 : vector<16x16xf32>
    %41 = arith.addf %40, %25 : vector<16x16xf32>
    %42 = math.exp %41 : vector<16x16xf32>
    %cst_16 = arith.constant dense<0.000000e+00> : vector<16xf32>
    %43 = vector.multi_reduction <add>, %42, %cst_16 [1] : vector<16x16xf32> to vector<16xf32>
    %44 = vector.shape_cast %43 : vector<16xf32> to vector<16x1xf32>
    %45 = tpu.reciprocal %44 {approx = true} : vector<16x1xf32> -> vector<16x1xf32>
    %46 = vector.broadcast %45 : vector<16x1xf32> to vector<16x16xf32>
    %47 = arith.mulf %42, %46 : vector<16x16xf32>
    %48 = arith.truncf %47 : vector<16x16xf32> to vector<16x16xbf16>
    %cst_17 = arith.constant dense<0.000000e+00> : vector<16x16xf32>
    %49 = tpu.matmul %48, %37, %cst_17 {dimension_numbers = #tpu.dot_dimension_numbers<[1], [0], [0], [1], [0, 0, 1, 1], [], []>} : vector<16x16xbf16>, vector<16x16xbf16>, vector<16x16xf32> -> vector<16x16xf32>
    %50 = vector.extract_strided_slice %31 {offsets = [0, 16], sizes = [16, 16], strides = [1, 1]} : vector<16x96xf32> to vector<16x16xf32>
    %51 = arith.truncf %50 : vector<16x16xf32> to vector<16x16xbf16>
    %52 = vector.extract_strided_slice %31 {offsets = [0, 48], sizes = [16, 16], strides = [1, 1]} : vector<16x96xf32> to vector<16x16xf32>
    %53 = arith.truncf %52 : vector<16x16xf32> to vector<16x16xbf16>
    %54 = vector.extract_strided_slice %31 {offsets = [0, 80], sizes = [16, 16], strides = [1, 1]} : vector<16x96xf32> to vector<16x16xf32>
    %55 = arith.truncf %54 : vector<16x16xf32> to vector<16x16xbf16>
    %cst_18 = arith.constant dense<0.000000e+00> : vector<16x16xf32>
    %56 = tpu.matmul %51, %53, %cst_18 {dimension_numbers = #tpu.dot_dimension_numbers<[1], [1], [0], [0], [0, 0, 1, 0], [], []>} : vector<16x16xbf16>, vector<16x16xbf16>, vector<16x16xf32> -> vector<16x16xf32>
    %cst_19 = arith.constant 2.500000e-01 : f32
    %57 = vector.broadcast %cst_19 : f32 to vector<16x16xf32>
    %58 = arith.mulf %56, %57 : vector<16x16xf32>
    %59 = arith.addf %58, %25 : vector<16x16xf32>
    %60 = math.exp %59 : vector<16x16xf32>
    %cst_20 = arith.constant dense<0.000000e+00> : vector<16xf32>
    %61 = vector.multi_reduction <add>, %60, %cst_20 [1] : vector<16x16xf32> to vector<16xf32>
    %62 = vector.shape_cast %61 : vector<16xf32> to vector<16x1xf32>
    %63 = tpu.reciprocal %62 {approx = true} : vector<16x1xf32> -> vector<16x1xf32>
    %64 = vector.broadcast %63 : vector<16x1xf32> to vector<16x16xf32>
    %65 = arith.mulf %60, %64 : vector<16x16xf32>
    %66 = arith.truncf %65 : vector<16x16xf32> to vector<16x16xbf16>
    %cst_21 = arith.constant dense<0.000000e+00> : vector<16x16xf32>
    %67 = tpu.matmul %66, %55, %cst_21 {dimension_numbers = #tpu.dot_dimension_numbers<[1], [0], [0], [1], [0, 0, 1, 1], [], []>} : vector<16x16xbf16>, vector<16x16xbf16>, vector<16x16xf32> -> vector<16x16xf32>
    %68 = tpu.concatenate %49, %67 in 1 : vector<16x16xf32>, vector<16x16xf32> -> vector<16x32xf32>
    %c32 = arith.constant 32 : index
    %c0_22 = arith.constant 0 : index
    %69 = vector.load %arg2[%c32, %c0_22] : memref<384x128xbf16, #tpu.memory_space<vmem>>, vector<32x32xbf16>
    %70 = arith.truncf %68 : vector<16x32xf32> to vector<16x32xbf16>
    %cst_23 = arith.constant dense<0.000000e+00> : vector<16x32xf32>
    %71 = tpu.matmul %70, %69, %cst_23 {dimension_numbers = #tpu.dot_dimension_numbers<[1], [0], [0], [1], [0, 0, 1, 1], [], []>} : vector<16x32xbf16>, vector<32x32xbf16>, vector<16x32xf32> -> vector<16x32xf32>
    %c3 = arith.constant 3 : index
    %c0_24 = arith.constant 0 : index
    %72 = vector.load %arg3[%c3, %c0_24] : memref<20x128xf32, #tpu.memory_space<vmem>>, vector<1x32xf32>
    %73 = vector.broadcast %72 : vector<1x32xf32> to vector<16x32xf32>
    %74 = arith.addf %71, %73 : vector<16x32xf32>
    %75 = arith.addf %74, %24 : vector<16x32xf32>
    %c4 = arith.constant 4 : index
    %c0_25 = arith.constant 0 : index
    %76 = vector.load %arg3[%c4, %c0_25] : memref<20x128xf32, #tpu.memory_space<vmem>>, vector<1x32xf32>
    %c5 = arith.constant 5 : index
    %c0_26 = arith.constant 0 : index
    %77 = vector.load %arg3[%c5, %c0_26] : memref<20x128xf32, #tpu.memory_space<vmem>>, vector<1x32xf32>
    %cst_27 = arith.constant dense<0.000000e+00> : vector<16xf32>
    %78 = vector.multi_reduction <add>, %75, %cst_27 [1] : vector<16x32xf32> to vector<16xf32>
    %79 = vector.shape_cast %78 : vector<16xf32> to vector<16x1xf32>
    %cst_28 = arith.constant 3.200000e+01 : f32
    %80 = vector.broadcast %cst_28 : f32 to vector<16x1xf32>
    %81 = arith.divf %79, %80 : vector<16x1xf32>
    %82 = vector.broadcast %81 : vector<16x1xf32> to vector<16x32xf32>
    %83 = arith.subf %75, %82 : vector<16x32xf32>
    %84 = arith.mulf %83, %83 : vector<16x32xf32>
    %cst_29 = arith.constant dense<0.000000e+00> : vector<16xf32>
    %85 = vector.multi_reduction <add>, %84, %cst_29 [1] : vector<16x32xf32> to vector<16xf32>
    %86 = vector.shape_cast %85 : vector<16xf32> to vector<16x1xf32>
    %cst_30 = arith.constant 3.200000e+01 : f32
    %87 = vector.broadcast %cst_30 : f32 to vector<16x1xf32>
    %88 = arith.divf %86, %87 : vector<16x1xf32>
    %89 = vector.broadcast %81 : vector<16x1xf32> to vector<16x32xf32>
    %90 = arith.subf %75, %89 : vector<16x32xf32>
    %cst_31 = arith.constant 9.99999996E-13 : f32
    %91 = vector.broadcast %cst_31 : f32 to vector<16x1xf32>
    %92 = arith.addf %88, %91 : vector<16x1xf32>
    %93 = math.rsqrt %92 : vector<16x1xf32>
    %94 = vector.broadcast %93 : vector<16x1xf32> to vector<16x32xf32>
    %95 = arith.mulf %90, %94 : vector<16x32xf32>
    %96 = vector.broadcast %76 : vector<1x32xf32> to vector<16x32xf32>
    %97 = arith.mulf %95, %96 : vector<16x32xf32>
    %98 = vector.broadcast %77 : vector<1x32xf32> to vector<16x32xf32>
    %99 = arith.addf %97, %98 : vector<16x32xf32>
    %c64 = arith.constant 64 : index
    %c0_32 = arith.constant 0 : index
    %100 = vector.load %arg2[%c64, %c0_32] : memref<384x128xbf16, #tpu.memory_space<vmem>>, vector<32x64xbf16>
    %101 = arith.truncf %99 : vector<16x32xf32> to vector<16x32xbf16>
    %cst_33 = arith.constant dense<0.000000e+00> : vector<16x64xf32>
    %102 = tpu.matmul %101, %100, %cst_33 {dimension_numbers = #tpu.dot_dimension_numbers<[1], [0], [0], [1], [0, 0, 1, 1], [], []>} : vector<16x32xbf16>, vector<32x64xbf16>, vector<16x64xf32> -> vector<16x64xf32>
    %c6 = arith.constant 6 : index
    %c0_34 = arith.constant 0 : index
    %103 = vector.load %arg3[%c6, %c0_34] : memref<20x128xf32, #tpu.memory_space<vmem>>, vector<1x64xf32>
    %104 = vector.broadcast %103 : vector<1x64xf32> to vector<16x64xf32>
    %105 = arith.addf %102, %104 : vector<16x64xf32>
    %cst_35 = arith.constant 5.000000e-01 : f32
    %106 = vector.broadcast %cst_35 : f32 to vector<16x64xf32>
    %107 = arith.mulf %106, %105 : vector<16x64xf32>
    %cst_36 = arith.constant 4.471500e-02 : f32
    %108 = vector.broadcast %cst_36 : f32 to vector<16x64xf32>
    %109 = arith.mulf %108, %105 : vector<16x64xf32>
    %110 = arith.mulf %109, %105 : vector<16x64xf32>
    %111 = arith.mulf %110, %105 : vector<16x64xf32>
    %112 = arith.addf %105, %111 : vector<16x64xf32>
    %cst_37 = arith.constant 0.797884583 : f32
    %113 = vector.broadcast %cst_37 : f32 to vector<16x64xf32>
    %114 = arith.mulf %113, %112 : vector<16x64xf32>
    %115 = math.tanh %114 : vector<16x64xf32>
    %cst_38 = arith.constant 1.000000e+00 : f32
    %116 = vector.broadcast %cst_38 : f32 to vector<16x64xf32>
    %117 = arith.addf %116, %115 : vector<16x64xf32>
    %118 = arith.mulf %107, %117 : vector<16x64xf32>
    %c96 = arith.constant 96 : index
    %c0_39 = arith.constant 0 : index
    %119 = vector.load %arg2[%c96, %c0_39] : memref<384x128xbf16, #tpu.memory_space<vmem>>, vector<64x32xbf16>
    %120 = arith.truncf %118 : vector<16x64xf32> to vector<16x64xbf16>
    %cst_40 = arith.constant dense<0.000000e+00> : vector<16x32xf32>
    %121 = tpu.matmul %120, %119, %cst_40 {dimension_numbers = #tpu.dot_dimension_numbers<[1], [0], [0], [1], [0, 0, 1, 1], [], []>} : vector<16x64xbf16>, vector<64x32xbf16>, vector<16x32xf32> -> vector<16x32xf32>
    %c7 = arith.constant 7 : index
    %c0_41 = arith.constant 0 : index
    %122 = vector.load %arg3[%c7, %c0_41] : memref<20x128xf32, #tpu.memory_space<vmem>>, vector<1x32xf32>
    %123 = vector.broadcast %122 : vector<1x32xf32> to vector<16x32xf32>
    %124 = arith.addf %121, %123 : vector<16x32xf32>
    %125 = arith.addf %124, %99 : vector<16x32xf32>
    %c8 = arith.constant 8 : index
    %c0_42 = arith.constant 0 : index
    %126 = vector.load %arg3[%c8, %c0_42] : memref<20x128xf32, #tpu.memory_space<vmem>>, vector<1x32xf32>
    %c9 = arith.constant 9 : index
    %c0_43 = arith.constant 0 : index
    %127 = vector.load %arg3[%c9, %c0_43] : memref<20x128xf32, #tpu.memory_space<vmem>>, vector<1x32xf32>
    %cst_44 = arith.constant dense<0.000000e+00> : vector<16xf32>
    %128 = vector.multi_reduction <add>, %125, %cst_44 [1] : vector<16x32xf32> to vector<16xf32>
    %129 = vector.shape_cast %128 : vector<16xf32> to vector<16x1xf32>
    %cst_45 = arith.constant 3.200000e+01 : f32
    %130 = vector.broadcast %cst_45 : f32 to vector<16x1xf32>
    %131 = arith.divf %129, %130 : vector<16x1xf32>
    %132 = vector.broadcast %131 : vector<16x1xf32> to vector<16x32xf32>
    %133 = arith.subf %125, %132 : vector<16x32xf32>
    %134 = arith.mulf %133, %133 : vector<16x32xf32>
    %cst_46 = arith.constant dense<0.000000e+00> : vector<16xf32>
    %135 = vector.multi_reduction <add>, %134, %cst_46 [1] : vector<16x32xf32> to vector<16xf32>
    %136 = vector.shape_cast %135 : vector<16xf32> to vector<16x1xf32>
    %cst_47 = arith.constant 3.200000e+01 : f32
    %137 = vector.broadcast %cst_47 : f32 to vector<16x1xf32>
    %138 = arith.divf %136, %137 : vector<16x1xf32>
    %139 = vector.broadcast %131 : vector<16x1xf32> to vector<16x32xf32>
    %140 = arith.subf %125, %139 : vector<16x32xf32>
    %cst_48 = arith.constant 9.99999996E-13 : f32
    %141 = vector.broadcast %cst_48 : f32 to vector<16x1xf32>
    %142 = arith.addf %138, %141 : vector<16x1xf32>
    %143 = math.rsqrt %142 : vector<16x1xf32>
    %144 = vector.broadcast %143 : vector<16x1xf32> to vector<16x32xf32>
    %145 = arith.mulf %140, %144 : vector<16x32xf32>
    %146 = vector.broadcast %126 : vector<1x32xf32> to vector<16x32xf32>
    %147 = arith.mulf %145, %146 : vector<16x32xf32>
    %148 = vector.broadcast %127 : vector<1x32xf32> to vector<16x32xf32>
    %149 = arith.addf %147, %148 : vector<16x32xf32>
    %c160 = arith.constant 160 : index
    %c0_49 = arith.constant 0 : index
    %150 = vector.load %arg2[%c160, %c0_49] : memref<384x128xbf16, #tpu.memory_space<vmem>>, vector<32x96xbf16>
    %151 = arith.truncf %149 : vector<16x32xf32> to vector<16x32xbf16>
    %cst_50 = arith.constant dense<0.000000e+00> : vector<16x96xf32>
    %152 = tpu.matmul %151, %150, %cst_50 {dimension_numbers = #tpu.dot_dimension_numbers<[1], [0], [0], [1], [0, 0, 1, 1], [], []>} : vector<16x32xbf16>, vector<32x96xbf16>, vector<16x96xf32> -> vector<16x96xf32>
    %c10 = arith.constant 10 : index
    %c0_51 = arith.constant 0 : index
    %153 = vector.load %arg3[%c10, %c0_51] : memref<20x128xf32, #tpu.memory_space<vmem>>, vector<1x96xf32>
    %154 = vector.broadcast %153 : vector<1x96xf32> to vector<16x96xf32>
    %155 = arith.addf %152, %154 : vector<16x96xf32>
    %156 = vector.extract_strided_slice %155 {offsets = [0, 0], sizes = [16, 16], strides = [1, 1]} : vector<16x96xf32> to vector<16x16xf32>
    %157 = arith.truncf %156 : vector<16x16xf32> to vector<16x16xbf16>
    %158 = vector.extract_strided_slice %155 {offsets = [0, 32], sizes = [16, 16], strides = [1, 1]} : vector<16x96xf32> to vector<16x16xf32>
    %159 = arith.truncf %158 : vector<16x16xf32> to vector<16x16xbf16>
    %160 = vector.extract_strided_slice %155 {offsets = [0, 64], sizes = [16, 16], strides = [1, 1]} : vector<16x96xf32> to vector<16x16xf32>
    %161 = arith.truncf %160 : vector<16x16xf32> to vector<16x16xbf16>
    %cst_52 = arith.constant dense<0.000000e+00> : vector<16x16xf32>
    %162 = tpu.matmul %157, %159, %cst_52 {dimension_numbers = #tpu.dot_dimension_numbers<[1], [1], [0], [0], [0, 0, 1, 0], [], []>} : vector<16x16xbf16>, vector<16x16xbf16>, vector<16x16xf32> -> vector<16x16xf32>
    %cst_53 = arith.constant 2.500000e-01 : f32
    %163 = vector.broadcast %cst_53 : f32 to vector<16x16xf32>
    %164 = arith.mulf %162, %163 : vector<16x16xf32>
    %165 = arith.addf %164, %25 : vector<16x16xf32>
    %166 = math.exp %165 : vector<16x16xf32>
    %cst_54 = arith.constant dense<0.000000e+00> : vector<16xf32>
    %167 = vector.multi_reduction <add>, %166, %cst_54 [1] : vector<16x16xf32> to vector<16xf32>
    %168 = vector.shape_cast %167 : vector<16xf32> to vector<16x1xf32>
    %169 = tpu.reciprocal %168 {approx = true} : vector<16x1xf32> -> vector<16x1xf32>
    %170 = vector.broadcast %169 : vector<16x1xf32> to vector<16x16xf32>
    %171 = arith.mulf %166, %170 : vector<16x16xf32>
    %172 = arith.truncf %171 : vector<16x16xf32> to vector<16x16xbf16>
    %cst_55 = arith.constant dense<0.000000e+00> : vector<16x16xf32>
    %173 = tpu.matmul %172, %161, %cst_55 {dimension_numbers = #tpu.dot_dimension_numbers<[1], [0], [0], [1], [0, 0, 1, 1], [], []>} : vector<16x16xbf16>, vector<16x16xbf16>, vector<16x16xf32> -> vector<16x16xf32>
    %174 = vector.extract_strided_slice %155 {offsets = [0, 16], sizes = [16, 16], strides = [1, 1]} : vector<16x96xf32> to vector<16x16xf32>
    %175 = arith.truncf %174 : vector<16x16xf32> to vector<16x16xbf16>
    %176 = vector.extract_strided_slice %155 {offsets = [0, 48], sizes = [16, 16], strides = [1, 1]} : vector<16x96xf32> to vector<16x16xf32>
    %177 = arith.truncf %176 : vector<16x16xf32> to vector<16x16xbf16>
    %178 = vector.extract_strided_slice %155 {offsets = [0, 80], sizes = [16, 16], strides = [1, 1]} : vector<16x96xf32> to vector<16x16xf32>
    %179 = arith.truncf %178 : vector<16x16xf32> to vector<16x16xbf16>
    %cst_56 = arith.constant dense<0.000000e+00> : vector<16x16xf32>
    %180 = tpu.matmul %175, %177, %cst_56 {dimension_numbers = #tpu.dot_dimension_numbers<[1], [1], [0], [0], [0, 0, 1, 0], [], []>} : vector<16x16xbf16>, vector<16x16xbf16>, vector<16x16xf32> -> vector<16x16xf32>
    %cst_57 = arith.constant 2.500000e-01 : f32
    %181 = vector.broadcast %cst_57 : f32 to vector<16x16xf32>
    %182 = arith.mulf %180, %181 : vector<16x16xf32>
    %183 = arith.addf %182, %25 : vector<16x16xf32>
    %184 = math.exp %183 : vector<16x16xf32>
    %cst_58 = arith.constant dense<0.000000e+00> : vector<16xf32>
    %185 = vector.multi_reduction <add>, %184, %cst_58 [1] : vector<16x16xf32> to vector<16xf32>
    %186 = vector.shape_cast %185 : vector<16xf32> to vector<16x1xf32>
    %187 = tpu.reciprocal %186 {approx = true} : vector<16x1xf32> -> vector<16x1xf32>
    %188 = vector.broadcast %187 : vector<16x1xf32> to vector<16x16xf32>
    %189 = arith.mulf %184, %188 : vector<16x16xf32>
    %190 = arith.truncf %189 : vector<16x16xf32> to vector<16x16xbf16>
    %cst_59 = arith.constant dense<0.000000e+00> : vector<16x16xf32>
    %191 = tpu.matmul %190, %179, %cst_59 {dimension_numbers = #tpu.dot_dimension_numbers<[1], [0], [0], [1], [0, 0, 1, 1], [], []>} : vector<16x16xbf16>, vector<16x16xbf16>, vector<16x16xf32> -> vector<16x16xf32>
    %192 = tpu.concatenate %173, %191 in 1 : vector<16x16xf32>, vector<16x16xf32> -> vector<16x32xf32>
    %c192 = arith.constant 192 : index
    %c0_60 = arith.constant 0 : index
    %193 = vector.load %arg2[%c192, %c0_60] : memref<384x128xbf16, #tpu.memory_space<vmem>>, vector<32x32xbf16>
    %194 = arith.truncf %192 : vector<16x32xf32> to vector<16x32xbf16>
    %cst_61 = arith.constant dense<0.000000e+00> : vector<16x32xf32>
    %195 = tpu.matmul %194, %193, %cst_61 {dimension_numbers = #tpu.dot_dimension_numbers<[1], [0], [0], [1], [0, 0, 1, 1], [], []>} : vector<16x32xbf16>, vector<32x32xbf16>, vector<16x32xf32> -> vector<16x32xf32>
    %c11 = arith.constant 11 : index
    %c0_62 = arith.constant 0 : index
    %196 = vector.load %arg3[%c11, %c0_62] : memref<20x128xf32, #tpu.memory_space<vmem>>, vector<1x32xf32>
    %197 = vector.broadcast %196 : vector<1x32xf32> to vector<16x32xf32>
    %198 = arith.addf %195, %197 : vector<16x32xf32>
    %199 = arith.addf %198, %149 : vector<16x32xf32>
    %c12 = arith.constant 12 : index
    %c0_63 = arith.constant 0 : index
    %200 = vector.load %arg3[%c12, %c0_63] : memref<20x128xf32, #tpu.memory_space<vmem>>, vector<1x32xf32>
    %c13 = arith.constant 13 : index
    %c0_64 = arith.constant 0 : index
    %201 = vector.load %arg3[%c13, %c0_64] : memref<20x128xf32, #tpu.memory_space<vmem>>, vector<1x32xf32>
    %cst_65 = arith.constant dense<0.000000e+00> : vector<16xf32>
    %202 = vector.multi_reduction <add>, %199, %cst_65 [1] : vector<16x32xf32> to vector<16xf32>
    %203 = vector.shape_cast %202 : vector<16xf32> to vector<16x1xf32>
    %cst_66 = arith.constant 3.200000e+01 : f32
    %204 = vector.broadcast %cst_66 : f32 to vector<16x1xf32>
    %205 = arith.divf %203, %204 : vector<16x1xf32>
    %206 = vector.broadcast %205 : vector<16x1xf32> to vector<16x32xf32>
    %207 = arith.subf %199, %206 : vector<16x32xf32>
    %208 = arith.mulf %207, %207 : vector<16x32xf32>
    %cst_67 = arith.constant dense<0.000000e+00> : vector<16xf32>
    %209 = vector.multi_reduction <add>, %208, %cst_67 [1] : vector<16x32xf32> to vector<16xf32>
    %210 = vector.shape_cast %209 : vector<16xf32> to vector<16x1xf32>
    %cst_68 = arith.constant 3.200000e+01 : f32
    %211 = vector.broadcast %cst_68 : f32 to vector<16x1xf32>
    %212 = arith.divf %210, %211 : vector<16x1xf32>
    %213 = vector.broadcast %205 : vector<16x1xf32> to vector<16x32xf32>
    %214 = arith.subf %199, %213 : vector<16x32xf32>
    %cst_69 = arith.constant 9.99999996E-13 : f32
    %215 = vector.broadcast %cst_69 : f32 to vector<16x1xf32>
    %216 = arith.addf %212, %215 : vector<16x1xf32>
    %217 = math.rsqrt %216 : vector<16x1xf32>
    %218 = vector.broadcast %217 : vector<16x1xf32> to vector<16x32xf32>
    %219 = arith.mulf %214, %218 : vector<16x32xf32>
    %220 = vector.broadcast %200 : vector<1x32xf32> to vector<16x32xf32>
    %221 = arith.mulf %219, %220 : vector<16x32xf32>
    %222 = vector.broadcast %201 : vector<1x32xf32> to vector<16x32xf32>
    %223 = arith.addf %221, %222 : vector<16x32xf32>
    %c224 = arith.constant 224 : index
    %c0_70 = arith.constant 0 : index
    %224 = vector.load %arg2[%c224, %c0_70] : memref<384x128xbf16, #tpu.memory_space<vmem>>, vector<32x64xbf16>
    %225 = arith.truncf %223 : vector<16x32xf32> to vector<16x32xbf16>
    %cst_71 = arith.constant dense<0.000000e+00> : vector<16x64xf32>
    %226 = tpu.matmul %225, %224, %cst_71 {dimension_numbers = #tpu.dot_dimension_numbers<[1], [0], [0], [1], [0, 0, 1, 1], [], []>} : vector<16x32xbf16>, vector<32x64xbf16>, vector<16x64xf32> -> vector<16x64xf32>
    %c14 = arith.constant 14 : index
    %c0_72 = arith.constant 0 : index
    %227 = vector.load %arg3[%c14, %c0_72] : memref<20x128xf32, #tpu.memory_space<vmem>>, vector<1x64xf32>
    %228 = vector.broadcast %227 : vector<1x64xf32> to vector<16x64xf32>
    %229 = arith.addf %226, %228 : vector<16x64xf32>
    %cst_73 = arith.constant 5.000000e-01 : f32
    %230 = vector.broadcast %cst_73 : f32 to vector<16x64xf32>
    %231 = arith.mulf %230, %229 : vector<16x64xf32>
    %cst_74 = arith.constant 4.471500e-02 : f32
    %232 = vector.broadcast %cst_74 : f32 to vector<16x64xf32>
    %233 = arith.mulf %232, %229 : vector<16x64xf32>
    %234 = arith.mulf %233, %229 : vector<16x64xf32>
    %235 = arith.mulf %234, %229 : vector<16x64xf32>
    %236 = arith.addf %229, %235 : vector<16x64xf32>
    %cst_75 = arith.constant 0.797884583 : f32
    %237 = vector.broadcast %cst_75 : f32 to vector<16x64xf32>
    %238 = arith.mulf %237, %236 : vector<16x64xf32>
    %239 = math.tanh %238 : vector<16x64xf32>
    %cst_76 = arith.constant 1.000000e+00 : f32
    %240 = vector.broadcast %cst_76 : f32 to vector<16x64xf32>
    %241 = arith.addf %240, %239 : vector<16x64xf32>
    %242 = arith.mulf %231, %241 : vector<16x64xf32>
    %c256 = arith.constant 256 : index
    %c0_77 = arith.constant 0 : index
    %243 = vector.load %arg2[%c256, %c0_77] : memref<384x128xbf16, #tpu.memory_space<vmem>>, vector<64x32xbf16>
    %244 = arith.truncf %242 : vector<16x64xf32> to vector<16x64xbf16>
    %cst_78 = arith.constant dense<0.000000e+00> : vector<16x32xf32>
    %245 = tpu.matmul %244, %243, %cst_78 {dimension_numbers = #tpu.dot_dimension_numbers<[1], [0], [0], [1], [0, 0, 1, 1], [], []>} : vector<16x64xbf16>, vector<64x32xbf16>, vector<16x32xf32> -> vector<16x32xf32>
    %c15 = arith.constant 15 : index
    %c0_79 = arith.constant 0 : index
    %246 = vector.load %arg3[%c15, %c0_79] : memref<20x128xf32, #tpu.memory_space<vmem>>, vector<1x32xf32>
    %247 = vector.broadcast %246 : vector<1x32xf32> to vector<16x32xf32>
    %248 = arith.addf %245, %247 : vector<16x32xf32>
    %249 = arith.addf %248, %223 : vector<16x32xf32>
    %c16 = arith.constant 16 : index
    %c0_80 = arith.constant 0 : index
    %250 = vector.load %arg3[%c16, %c0_80] : memref<20x128xf32, #tpu.memory_space<vmem>>, vector<1x32xf32>
    %c17 = arith.constant 17 : index
    %c0_81 = arith.constant 0 : index
    %251 = vector.load %arg3[%c17, %c0_81] : memref<20x128xf32, #tpu.memory_space<vmem>>, vector<1x32xf32>
    %cst_82 = arith.constant dense<0.000000e+00> : vector<16xf32>
    %252 = vector.multi_reduction <add>, %249, %cst_82 [1] : vector<16x32xf32> to vector<16xf32>
    %253 = vector.shape_cast %252 : vector<16xf32> to vector<16x1xf32>
    %cst_83 = arith.constant 3.200000e+01 : f32
    %254 = vector.broadcast %cst_83 : f32 to vector<16x1xf32>
    %255 = arith.divf %253, %254 : vector<16x1xf32>
    %256 = vector.broadcast %255 : vector<16x1xf32> to vector<16x32xf32>
    %257 = arith.subf %249, %256 : vector<16x32xf32>
    %258 = arith.mulf %257, %257 : vector<16x32xf32>
    %cst_84 = arith.constant dense<0.000000e+00> : vector<16xf32>
    %259 = vector.multi_reduction <add>, %258, %cst_84 [1] : vector<16x32xf32> to vector<16xf32>
    %260 = vector.shape_cast %259 : vector<16xf32> to vector<16x1xf32>
    %cst_85 = arith.constant 3.200000e+01 : f32
    %261 = vector.broadcast %cst_85 : f32 to vector<16x1xf32>
    %262 = arith.divf %260, %261 : vector<16x1xf32>
    %263 = vector.broadcast %255 : vector<16x1xf32> to vector<16x32xf32>
    %264 = arith.subf %249, %263 : vector<16x32xf32>
    %cst_86 = arith.constant 9.99999996E-13 : f32
    %265 = vector.broadcast %cst_86 : f32 to vector<16x1xf32>
    %266 = arith.addf %262, %265 : vector<16x1xf32>
    %267 = math.rsqrt %266 : vector<16x1xf32>
    %268 = vector.broadcast %267 : vector<16x1xf32> to vector<16x32xf32>
    %269 = arith.mulf %264, %268 : vector<16x32xf32>
    %270 = vector.broadcast %250 : vector<1x32xf32> to vector<16x32xf32>
    %271 = arith.mulf %269, %270 : vector<16x32xf32>
    %272 = vector.broadcast %251 : vector<1x32xf32> to vector<16x32xf32>
    %273 = arith.addf %271, %272 : vector<16x32xf32>
    %c320 = arith.constant 320 : index
    %c0_87 = arith.constant 0 : index
    %274 = vector.load %arg2[%c320, %c0_87] : memref<384x128xbf16, #tpu.memory_space<vmem>>, vector<32x32xbf16>
    %275 = arith.truncf %273 : vector<16x32xf32> to vector<16x32xbf16>
    %cst_88 = arith.constant dense<0.000000e+00> : vector<16x32xf32>
    %276 = tpu.matmul %275, %274, %cst_88 {dimension_numbers = #tpu.dot_dimension_numbers<[1], [0], [0], [1], [0, 0, 1, 1], [], []>} : vector<16x32xbf16>, vector<32x32xbf16>, vector<16x32xf32> -> vector<16x32xf32>
    %c18 = arith.constant 18 : index
    %c0_89 = arith.constant 0 : index
    %277 = vector.load %arg3[%c18, %c0_89] : memref<20x128xf32, #tpu.memory_space<vmem>>, vector<1x32xf32>
    %278 = vector.broadcast %277 : vector<1x32xf32> to vector<16x32xf32>
    %279 = arith.addf %276, %278 : vector<16x32xf32>
    %280 = math.tanh %279 : vector<16x32xf32>
    %c352 = arith.constant 352 : index
    %c0_90 = arith.constant 0 : index
    %281 = vector.load %arg2[%c352, %c0_90] : memref<384x128xbf16, #tpu.memory_space<vmem>>, vector<32x128xbf16>
    %282 = arith.truncf %280 : vector<16x32xf32> to vector<16x32xbf16>
    %cst_91 = arith.constant dense<0.000000e+00> : vector<16x128xf32>
    %283 = tpu.matmul %282, %281, %cst_91 {dimension_numbers = #tpu.dot_dimension_numbers<[1], [0], [0], [1], [0, 0, 1, 1], [], []>} : vector<16x32xbf16>, vector<32x128xbf16>, vector<16x128xf32> -> vector<16x128xf32>
    %c19 = arith.constant 19 : index
    %c0_92 = arith.constant 0 : index
    %284 = vector.load %arg3[%c19, %c0_92] : memref<20x128xf32, #tpu.memory_space<vmem>>, vector<1x128xf32>
    %285 = vector.broadcast %284 : vector<1x128xf32> to vector<16x128xf32>
    %286 = arith.addf %283, %285 : vector<16x128xf32>
    %c0_93 = arith.constant 0 : index
    %c0_94 = arith.constant 0 : index
    %287 = vector.load %arg4[%c0_93, %c0_94] : memref<16x128xf32, #tpu.memory_space<vmem>>, vector<16x128xf32>
    tpu.vector_store %arg4[%c0_93, %c0_94], %286 {strides = array<i32>} : memref<16x128xf32, #tpu.memory_space<vmem>>, vector<16x128xf32>,
    return
  }
}

</mosaic_0001>

<llo_original>
// kernel: mul.8
$region0: #{mul.8}
  %s0 = inlined_call_operand.vmem [shape: f32[2,8], index: 0, kind: input, shape index: {}]
  %s1 = inlined_call_operand.vmem [shape: f32[16], index: 1, kind: output, shape index: {}]
  $region1: #{mul.8} parent=0
    #allocation0 [shape = 'u8[4096]{0}', space=vmem, size = 0x1000, scoped, tag = 'scoped mem for output reshape']
    #allocation1 [shape = 'u8[4096]{0}', space=vmem, size = 0x1000, scoped, tag = 'scoped mem for input reshape']
    %s3 = sshllo.u32 0, 2
    %v4 = vld [vmem:[%s0] sm:%s3]
    %5 = vst [vmem:[#allocation1] sm:%s3] %v4
    %v6 = vld [vmem:[#allocation1] sm:$0x1]
    %vm7 = vcmask 64512
    %8 = vst.msk [vmem:[#allocation0] sm:$0x1] %vm7, %v6
    %s9 = scalar_lea.vmem [#allocation1], 1
    %v10 = vld [vmem:[%s9] sm:$0x1]
    %11 = vrot.lane.b32.xlu0 %v10, 8
    %v12 = vpop.permute.xlu0 %11
    %vm13 = vcmask 130112
    %14 = vst.msk [vmem:[#allocation0] sm:$0x1] %vm13, %v12
    %s16 = sshllo.u32 0, 1
    %v18 = vld [vmem:[#allocation0] sm:%s16]
    %s19 = sshllo.u32 0, 1
    %20 = vst [vmem:[%s1] sm:%s19] %v18

// kernel: bert_classifier_forward.1
$region0: #{bert_classifier_forward.1}
  #allocation0 [shape = 'u32[]', space=smem, size = 0x4, offset = 0x4, fixed_abs, tag = 'smem constant byte address 0x4 - core index']
  #allocation1 [shape = 'u32[144,128]{1,0:T(1,128)}', space=vmem, size = 0x12000, scoped, tag = 'internal scratch']
  %s0 = inlined_call_operand.vmem [shape: f32[16,32], index: 0, kind: input, shape index: {}]
  %s1 = inlined_call_operand.vmem [shape: f32[16,16], index: 1, kind: input, shape index: {}]
  %s2 = inlined_call_operand.vmem [shape: bf16[384,128], index: 2, kind: input, shape index: {}]
  %s3 = inlined_call_operand.vmem [shape: f32[20,128], index: 3, kind: input, shape index: {}]
  %s4 = inlined_call_operand.vmem [shape: f32[16,128], index: 4, kind: output, shape index: {}]
  %s5 = sld [smem:[#allocation0]]
  $region26: #{bert_classifier_forward.1} parent=0
    _
  %s7 = ssub.s32 1, %s5
  %s8 = scalar_select 0, %s7, %s5
  // Predicated region
  $region2: #{bert_classifier_forward.1} parent=0 // pred_check
    _
  $region3: #{bert_classifier_forward.1} parent=0 // pred_check_branch
    %10 = sbr.rel (0) target = $region5
  $region4: #{bert_classifier_forward.1} parent=0 // pred_region
    _
  $region5: #{bert_classifier_forward.1} parent=0 // pred_fallthru
    _
  // Predicated region
  $region6: #{bert_classifier_forward.1} parent=0 // pred_check
    _
  $region7: #{bert_classifier_forward.1} parent=0 // pred_check_branch
    %12 = sbr.rel (0) target = $region9
  $region8: #{bert_classifier_forward.1} parent=0 // pred_region
    _
  $region9: #{bert_classifier_forward.1} parent=0 // pred_fallthru
    _
  // Predicated region
  $region10: #{bert_classifier_forward.1} parent=0 // pred_check
    _
  $region11: #{bert_classifier_forward.1} parent=0 // pred_check_branch
    %14 = sbr.rel (0) target = $region13
  $region12: #{bert_classifier_forward.1} parent=0 // pred_region
    _
  $region13: #{bert_classifier_forward.1} parent=0 // pred_fallthru
    _
  // Predicated region
  $region14: #{bert_classifier_forward.1} parent=0 // pred_check
    _
  $region15: #{bert_classifier_forward.1} parent=0 // pred_check_branch
    %16 = sbr.rel (0) target = $region17
  $region16: #{bert_classifier_forward.1} parent=0 // pred_region
    _
  $region17: #{bert_classifier_forward.1} parent=0 // pred_fallthru
    _
  %v18 = vld [vmem:[%s0] sm:$0xff]
  %v19 = vld [vmem:[%s0 + $0x8] sm:$0xff]
  %v20 = vld [vmem:[%s3] sm:$0x1]
  %v21 = vld [vmem:[%s3 + $0x1] sm:$0x1]
  %vm22 = vcmask 261120
  %v23 = vsel %vm22, %v18, 0.0
  %24 = vadd.xlane.f32.xlu0 %v23
  %v25 = vpop.xlane.xlu0 %24
  %v26 = vsel %vm22, %v19, 0.0
  %27 = vadd.xlane.f32.xlu0 %v26
  %v28 = vpop.xlane.xlu0 %27
  %v29 = vrcp.pop 32.0
  %v30 = vmul.f32 %v25, %v29
  %v31 = vmul.f32 %v28, %v29
  %v32 = vsub.f32 %v18, %v30
  %v33 = vsub.f32 %v19, %v31
  %v34 = vmul.f32 %v32, %v32
  %v35 = vmul.f32 %v33, %v33
  %v36 = vsel %vm22, %v34, 0.0
  %37 = vadd.xlane.f32.xlu0 %v36
  %v38 = vpop.xlane.xlu0 %37
  %v39 = vsel %vm22, %v35, 0.0
  %40 = vadd.xlane.f32.xlu0 %v39
  %v41 = vpop.xlane.xlu0 %40
  %v42 = vmul.f32 %v38, %v29
  %v43 = vmul.f32 %v41, %v29
  %v44 = vadd.f32 %v42, 1e-12
  %v45 = vadd.f32 %v43, 1e-12
  %v46 = vrsqrt.pop %v44
  %v47 = vrsqrt.pop %v45
  %v48 = vmul.f32 %v32, %v46
  %v49 = vmul.f32 %v33, %v47
  %v50 = vlaneseq
  %v51 = vshrl.u32 %v50, 7
  %v52 = vsub.s32 0, %v51
  %v53 = vrot.slane %v20, %v52
  %v54 = vmul.f32 %v48, %v53
  %v55 = vmul.f32 %v49, %v53
  %v56 = vlaneseq
  %v57 = vshrl.u32 %v56, 7
  %v58 = vsub.s32 0, %v57
  %v59 = vrot.slane %v21, %v58
  %v60 = vadd.f32 %v54, %v59
  %v61 = vadd.f32 %v55, %v59
  %v62 = vld [vmem:[%s1] sm:$0xff]
  %v63 = vld [vmem:[%s1 + $0x8] sm:$0xff]
  %v64 = vld [vmem:[%s2] sm:$0xf]
  %v65 = vld [vmem:[%s2 + $0x4] sm:$0xf]
  %v66 = vld [vmem:[%s2 + $0x8] sm:$0xf]
  %v67 = vld [vmem:[%s2 + $0xc] sm:$0xf]
  %v68 = vpack.c.bf16 %v61, %v60
  %v69 = vld [vmem:[%s3 + $0x2] sm:$0x1]
  %v70 = vlaneseq
  %v71 = vshrl.u32 %v70, 7
  %v72 = vsub.s32 0, %v71
  %v73 = vrot.slane %v69, %v72
  %v78 = vunpack.c.l.b16 %v64
  %v79 = vunpack.c.l.b16 %v65
  %v80 = vunpack.c.l.b16 %v66
  %v81 = vunpack.c.l.b16 %v67
  %v82 = vpack.c.b16 %v79, %v78
  %v83 = vpack.c.b16 %v81, %v80
  %v87 = vsel %vm22, %v68, 0
  %89 = vmatprep.subr.bf16.mxu0 0
  %90 = vmatpush1.bf16.msra.mxu0 %v82
  %91 = vmatprep.subr.bf16.mxu0 0
  %92 = vmatpush1.bf16.msra.mxu0 %v83
  %93 = vmatprep.subr.bf16.mxu0 0
  %94 = vmatpush1.bf16.msra.mxu0 0
  %95 = vmatprep.subr.bf16.mxu0 0
  %96 = vmatpush1.bf16.msra.mxu0 0
  %97 = vmatprep.subr.bf16.mxu0 0
  %98 = vmatpush1.bf16.msra.mxu0 0
  %99 = vmatprep.subr.bf16.mxu0 0
  %100 = vmatpush1.bf16.msra.mxu0 0
  %101 = vmatprep.subr.bf16.mxu0 0
  %102 = vmatpush1.bf16.msra.mxu0 0
  %103 = vmatprep.subr.bf16.mxu0 0
  %104 = vmatpush1.bf16.msra.mxu0 0
  %105 = vmatprep.subr.bf16.mxu0 0
  %106 = vmatpush1.bf16.msra.mxu0 0
  %107 = vmatprep.subr.bf16.mxu0 0
  %108 = vmatpush1.bf16.msra.mxu0 0
  %109 = vmatprep.subr.bf16.mxu0 0
  %110 = vmatpush1.bf16.msra.mxu0 0
  %111 = vmatprep.subr.bf16.mxu0 0
  %112 = vmatpush1.bf16.msra.mxu0 0
  %113 = vmatprep.subr.bf16.mxu0 0
  %114 = vmatpush1.bf16.msra.mxu0 0
  %115 = vmatprep.subr.bf16.mxu0 0
  %116 = vmatpush1.bf16.msra.mxu0 0
  %117 = vmatprep.subr.bf16.mxu0 0
  %118 = vmatpush1.bf16.msra.mxu0 0
  %119 = vmatprep.subr.bf16.mxu0 0
  %120 = vmatpush1.bf16.msra.mxu0 0
  %121 = vmatprep.mubr.bf16.mxu0 0
  %122 = vmatmul.mubr.bf16.gmra.mrb[0].mxu0 %v87
  %v123 = vpop.f32.mrb[0].mxu0
  %v124 = vadd.f32 %v73, %v123
  %v125 = vpop.f32.mrb[0].mxu0
  %v126 = vpop.f32.mrb[0].mxu0
  %v127 = vadd.f32 %v73, %v126
  %v128 = vpop.f32.mrb[0].mxu0
  %129 = vdwg.mxu0
  %v130 = vpack.c.bf16 %v127, %v124
  %132 = vrot.lane.b32.xlu0 %v130, 96
  %v133 = vpop.permute.xlu0 %132
  %vm134 = vcmask 130048
  %v136 = vsel %vm134, %v130, 0
  %v139 = vsel %vm134, %v133, 0
  %141 = vmatprep.subr.bf16.mxu0 0
  %142 = vmatpush1.bf16.xpose.msra.mxu0 %v139
  %143 = vmatprep.subr.bf16.mxu0 0
  %144 = vmatpush1.bf16.xpose.msra.mxu0 0
  %145 = vmatprep.subr.bf16.mxu0 0
  %146 = vmatpush1.bf16.xpose.msra.mxu0 0
  %147 = vmatprep.subr.bf16.mxu0 0
  %148 = vmatpush1.bf16.xpose.msra.mxu0 0
  %149 = vmatprep.subr.bf16.mxu0 0
  %150 = vmatpush1.bf16.xpose.msra.mxu0 0
  %151 = vmatprep.subr.bf16.mxu0 0
  %152 = vmatpush1.bf16.xpose.msra.mxu0 0
  %153 = vmatprep.subr.bf16.mxu0 0
  %154 = vmatpush1.bf16.xpose.msra.mxu0 0
  %155 = vmatprep.subr.bf16.mxu0 0
  %156 = vmatpush1.bf16.xpose.msra.mxu0 0
  %157 = vmatprep.subr.bf16.mxu0 0
  %158 = vmatpush1.bf16.xpose.msra.mxu0 0
  %159 = vmatprep.subr.bf16.mxu0 0
  %160 = vmatpush1.bf16.xpose.msra.mxu0 0
  %161 = vmatprep.subr.bf16.mxu0 0
  %162 = vmatpush1.bf16.xpose.msra.mxu0 0
  %163 = vmatprep.subr.bf16.mxu0 0
  %164 = vmatpush1.bf16.xpose.msra.mxu0 0
  %165 = vmatprep.subr.bf16.mxu0 0
  %166 = vmatpush1.bf16.xpose.msra.mxu0 0
  %167 = vmatprep.subr.bf16.mxu0 0
  %168 = vmatpush1.bf16.xpose.msra.mxu0 0
  %169 = vmatprep.subr.bf16.mxu0 0
  %170 = vmatpush1.bf16.xpose.msra.mxu0 0
  %171 = vmatprep.subr.bf16.mxu0 0
  %172 = vmatpush1.bf16.xpose.msra.mxu0 0
  %173 = vmatprep.mubr.bf16.mxu0 0
  %174 = vmatmul.mubr.bf16.gmra.mrb[0].mxu0 %v136
  %v175 = vpop.f32.mrb[0].mxu0
  %v176 = vadd.f32 0.0, %v175
  %v177 = vpop.f32.mrb[0].mxu0
  %v178 = vpop.f32.mrb[0].mxu0
  %v179 = vadd.f32 0.0, %v178
  %v180 = vpop.f32.mrb[0].mxu0
  %181 = vdwg.mxu0
  %v182 = vmul.f32 %v176, 0.25
  %v183 = vmul.f32 %v179, 0.25
  %v184 = vadd.f32 %v182, %v62
  %v185 = vadd.f32 %v183, %v63
  %v186 = vmul.f32 %v184, 1.442695
  %v187 = vpow.pop %v186
  %v188 = vmul.f32 %v185, 1.442695
  %v189 = vpow.pop %v188
  %v190 = vsel %vm134, %v187, 0.0
  %191 = vadd.xlane.f32.xlu0 %v190
  %v192 = vpop.xlane.xlu0 %191
  %v193 = vsel %vm134, %v189, 0.0
  %194 = vadd.xlane.f32.xlu0 %v193
  %v195 = vpop.xlane.xlu0 %194
  %v196 = vrcp.pop %v192
  %v197 = vrcp.pop %v195
  %v198 = vmul.f32 %v187, %v196
  %v199 = vmul.f32 %v189, %v197
  %v200 = vpack.c.bf16 %v199, %v198
  %201 = vrot.lane.b32.xlu0 %v130, 64
  %v202 = vpop.permute.xlu0 %201
  %v205 = vsel %vm134, %v200, 0
  %207 = vmatprep.subr.bf16.mxu0 0
  %208 = vmatpush1.bf16.msra.mxu0 %v202
  %209 = vmatprep.subr.bf16.mxu0 0
  %210 = vmatpush1.bf16.msra.mxu0 0
  %211 = vmatprep.subr.bf16.mxu0 0
  %212 = vmatpush1.bf16.msra.mxu0 0
  %213 = vmatprep.subr.bf16.mxu0 0
  %214 = vmatpush1.bf16.msra.mxu0 0
  %215 = vmatprep.subr.bf16.mxu0 0
  %216 = vmatpush1.bf16.msra.mxu0 0
  %217 = vmatprep.subr.bf16.mxu0 0
  %218 = vmatpush1.bf16.msra.mxu0 0
  %219 = vmatprep.subr.bf16.mxu0 0
  %220 = vmatpush1.bf16.msra.mxu0 0
  %221 = vmatprep.subr.bf16.mxu0 0
  %222 = vmatpush1.bf16.msra.mxu0 0
  %223 = vmatprep.subr.bf16.mxu0 0
  %224 = vmatpush1.bf16.msra.mxu0 0
  %225 = vmatprep.subr.bf16.mxu0 0
  %226 = vmatpush1.bf16.msra.mxu0 0
  %227 = vmatprep.subr.bf16.mxu0 0
  %228 = vmatpush1.bf16.msra.mxu0 0
  %229 = vmatprep.subr.bf16.mxu0 0
  %230 = vmatpush1.bf16.msra.mxu0 0
  %231 = vmatprep.subr.bf16.mxu0 0
  %232 = vmatpush1.bf16.msra.mxu0 0
  %233 = vmatprep.subr.bf16.mxu0 0
  %234 = vmatpush1.bf16.msra.mxu0 0
  %235 = vmatprep.subr.bf16.mxu0 0
  %236 = vmatpush1.bf16.msra.mxu0 0
  %237 = vmatprep.subr.bf16.mxu0 0
  %238 = vmatpush1.bf16.msra.mxu0 0
  %239 = vmatprep.mubr.bf16.mxu0 0
  %240 = vmatmul.mubr.bf16.gmra.mrb[0].mxu0 %v205
  %v241 = vpop.f32.mrb[0].mxu0
  %v242 = vadd.f32 0.0, %v241
  %v243 = vpop.f32.mrb[0].mxu0
  %v244 = vpop.f32.mrb[0].mxu0
  %v245 = vadd.f32 0.0, %v244
  %v246 = vpop.f32.mrb[0].mxu0
  %247 = vdwg.mxu0
  %248 = vrot.lane.b32.xlu0 %v130, 112
  %v249 = vpop.permute.xlu0 %248
  %250 = vrot.lane.b32.xlu0 %v130, 80
  %v251 = vpop.permute.xlu0 %250
  %v253 = vsel %vm134, %v249, 0
  %v256 = vsel %vm134, %v251, 0
  %258 = vmatprep.subr.bf16.mxu0 0
  %259 = vmatpush1.bf16.xpose.msra.mxu0 %v256
  %260 = vmatprep.subr.bf16.mxu0 0
  %261 = vmatpush1.bf16.xpose.msra.mxu0 0
  %262 = vmatprep.subr.bf16.mxu0 0
  %263 = vmatpush1.bf16.xpose.msra.mxu0 0
  %264 = vmatprep.subr.bf16.mxu0 0
  %265 = vmatpush1.bf16.xpose.msra.mxu0 0
  %266 = vmatprep.subr.bf16.mxu0 0
  %267 = vmatpush1.bf16.xpose.msra.mxu0 0
  %268 = vmatprep.subr.bf16.mxu0 0
  %269 = vmatpush1.bf16.xpose.msra.mxu0 0
  %270 = vmatprep.subr.bf16.mxu0 0
  %271 = vmatpush1.bf16.xpose.msra.mxu0 0
  %272 = vmatprep.subr.bf16.mxu0 0
  %273 = vmatpush1.bf16.xpose.msra.mxu0 0
  %274 = vmatprep.subr.bf16.mxu0 0
  %275 = vmatpush1.bf16.xpose.msra.mxu0 0
  %276 = vmatprep.subr.bf16.mxu0 0
  %277 = vmatpush1.bf16.xpose.msra.mxu0 0
  %278 = vmatprep.subr.bf16.mxu0 0
  %279 = vmatpush1.bf16.xpose.msra.mxu0 0
  %280 = vmatprep.subr.bf16.mxu0 0
  %281 = vmatpush1.bf16.xpose.msra.mxu0 0
  %282 = vmatprep.subr.bf16.mxu0 0
  %283 = vmatpush1.bf16.xpose.msra.mxu0 0
  %284 = vmatprep.subr.bf16.mxu0 0
  %285 = vmatpush1.bf16.xpose.msra.mxu0 0
  %286 = vmatprep.subr.bf16.mxu0 0
  %287 = vmatpush1.bf16.xpose.msra.mxu0 0
  %288 = vmatprep.subr.bf16.mxu0 0
  %289 = vmatpush1.bf16.xpose.msra.mxu0 0
  %290 = vmatprep.mubr.bf16.mxu0 0
  %291 = vmatmul.mubr.bf16.gmra.mrb[0].mxu0 %v253
  %v292 = vpop.f32.mrb[0].mxu0
  %v293 = vadd.f32 0.0, %v292
  %v294 = vpop.f32.mrb[0].mxu0
  %v295 = vpop.f32.mrb[0].mxu0
  %v296 = vadd.f32 0.0, %v295
  %v297 = vpop.f32.mrb[0].mxu0
  %298 = vdwg.mxu0
  %v299 = vmul.f32 %v293, 0.25
  %v300 = vmul.f32 %v296, 0.25
  %v301 = vadd.f32 %v299, %v62
  %v302 = vadd.f32 %v300, %v63
  %v303 = vmul.f32 %v301, 1.442695
  %v304 = vpow.pop %v303
  %v305 = vmul.f32 %v302, 1.442695
  %v306 = vpow.pop %v305
  %v307 = vsel %vm134, %v304, 0.0
  %308 = vadd.xlane.f32.xlu0 %v307
  %v309 = vpop.xlane.xlu0 %308
  %v310 = vsel %vm134, %v306, 0.0
  %311 = vadd.xlane.f32.xlu0 %v310
  %v312 = vpop.xlane.xlu0 %311
  %v313 = vrcp.pop %v309
  %v314 = vrcp.pop %v312
  %v315 = vmul.f32 %v304, %v313
  %v316 = vmul.f32 %v306, %v314
  %v317 = vpack.c.bf16 %v316, %v315
  %318 = vrot.lane.b32.xlu0 %v130, 48
  %v319 = vpop.permute.xlu0 %318
  %v322 = vsel %vm134, %v317, 0
  %324 = vmatprep.subr.bf16.mxu0 0
  %325 = vmatpush1.bf16.msra.mxu0 %v319
  %326 = vmatprep.subr.bf16.mxu0 0
  %327 = vmatpush1.bf16.msra.mxu0 0
  %328 = vmatprep.subr.bf16.mxu0 0
  %329 = vmatpush1.bf16.msra.mxu0 0
  %330 = vmatprep.subr.bf16.mxu0 0
  %331 = vmatpush1.bf16.msra.mxu0 0
  %332 = vmatprep.subr.bf16.mxu0 0
  %333 = vmatpush1.bf16.msra.mxu0 0
  %334 = vmatprep.subr.bf16.mxu0 0
  %335 = vmatpush1.bf16.msra.mxu0 0
  %336 = vmatprep.subr.bf16.mxu0 0
  %337 = vmatpush1.bf16.msra.mxu0 0
  %338 = vmatprep.subr.bf16.mxu0 0
  %339 = vmatpush1.bf16.msra.mxu0 0
  %340 = vmatprep.subr.bf16.mxu0 0
  %341 = vmatpush1.bf16.msra.mxu0 0
  %342 = vmatprep.subr.bf16.mxu0 0
  %343 = vmatpush1.bf16.msra.mxu0 0
  %344 = vmatprep.subr.bf16.mxu0 0
  %345 = vmatpush1.bf16.msra.mxu0 0
  %346 = vmatprep.subr.bf16.mxu0 0
  %347 = vmatpush1.bf16.msra.mxu0 0
  %348 = vmatprep.subr.bf16.mxu0 0
  %349 = vmatpush1.bf16.msra.mxu0 0
  %350 = vmatprep.subr.bf16.mxu0 0
  %351 = vmatpush1.bf16.msra.mxu0 0
  %352 = vmatprep.subr.bf16.mxu0 0
  %353 = vmatpush1.bf16.msra.mxu0 0
  %354 = vmatprep.subr.bf16.mxu0 0
  %355 = vmatpush1.bf16.msra.mxu0 0
  %356 = vmatprep.mubr.bf16.mxu0 0
  %357 = vmatmul.mubr.bf16.gmra.mrb[0].mxu0 %v322
  %v358 = vpop.f32.mrb[0].mxu0
  %v359 = vadd.f32 0.0, %v358
  %v360 = vpop.f32.mrb[0].mxu0
  %v361 = vpop.f32.mrb[0].mxu0
  %v362 = vadd.f32 0.0, %v361
  %v363 = vpop.f32.mrb[0].mxu0
  %364 = vdwg.mxu0
  %367 = vrot.lane.b32.xlu0 %v359, 16
  %v368 = vpop.permute.xlu0 %367
  %369 = vrot.lane.b32.xlu0 %v362, 16
  %v370 = vpop.permute.xlu0 %369
  %v373 = vsel %vm134, %v242, %v368
  %v374 = vsel %vm134, %v245, %v370
  %v375 = vld [vmem:[%s2 + $0x10] sm:$0xf]
  %v376 = vld [vmem:[%s2 + $0x14] sm:$0xf]
  %v377 = vld [vmem:[%s2 + $0x18] sm:$0xf]
  %v378 = vld [vmem:[%s2 + $0x1c] sm:$0xf]
  %v379 = vpack.c.bf16 %v374, %v373
  %v380 = vld [vmem:[%s3 + $0x3] sm:$0x1]
  %v381 = vlaneseq
  %v382 = vshrl.u32 %v381, 7
  %v383 = vsub.s32 0, %v382
  %v384 = vrot.slane %v380, %v383
  %v389 = vunpack.c.l.b16 %v375
  %v390 = vunpack.c.l.b16 %v376
  %v391 = vunpack.c.l.b16 %v377
  %v392 = vunpack.c.l.b16 %v378
  %v393 = vpack.c.b16 %v390, %v389
  %v394 = vpack.c.b16 %v392, %v391
  %v398 = vsel %vm22, %v379, 0
  %400 = vmatprep.subr.bf16.mxu0 0
  %401 = vmatpush1.bf16.msra.mxu0 %v393
  %402 = vmatprep.subr.bf16.mxu0 0
  %403 = vmatpush1.bf16.msra.mxu0 %v394
  %404 = vmatprep.subr.bf16.mxu0 0
  %405 = vmatpush1.bf16.msra.mxu0 0
  %406 = vmatprep.subr.bf16.mxu0 0
  %407 = vmatpush1.bf16.msra.mxu0 0
  %408 = vmatprep.subr.bf16.mxu0 0
  %409 = vmatpush1.bf16.msra.mxu0 0
  %410 = vmatprep.subr.bf16.mxu0 0
  %411 = vmatpush1.bf16.msra.mxu0 0
  %412 = vmatprep.subr.bf16.mxu0 0
  %413 = vmatpush1.bf16.msra.mxu0 0
  %414 = vmatprep.subr.bf16.mxu0 0
  %415 = vmatpush1.bf16.msra.mxu0 0
  %416 = vmatprep.subr.bf16.mxu0 0
  %417 = vmatpush1.bf16.msra.mxu0 0
  %418 = vmatprep.subr.bf16.mxu0 0
  %419 = vmatpush1.bf16.msra.mxu0 0
  %420 = vmatprep.subr.bf16.mxu0 0
  %421 = vmatpush1.bf16.msra.mxu0 0
  %422 = vmatprep.subr.bf16.mxu0 0
  %423 = vmatpush1.bf16.msra.mxu0 0
  %424 = vmatprep.subr.bf16.mxu0 0
  %425 = vmatpush1.bf16.msra.mxu0 0
  %426 = vmatprep.subr.bf16.mxu0 0
  %427 = vmatpush1.bf16.msra.mxu0 0
  %428 = vmatprep.subr.bf16.mxu0 0
  %429 = vmatpush1.bf16.msra.mxu0 0
  %430 = vmatprep.subr.bf16.mxu0 0
  %431 = vmatpush1.bf16.msra.mxu0 0
  %432 = vmatprep.mubr.bf16.mxu0 0
  %433 = vmatmul.mubr.bf16.gmra.mrb[0].mxu0 %v398
  %v434 = vpop.f32.mrb[0].mxu0
  %v435 = vadd.f32 %v384, %v434
  %v436 = vpop.f32.mrb[0].mxu0
  %v437 = vpop.f32.mrb[0].mxu0
  %v438 = vadd.f32 %v384, %v437
  %v439 = vpop.f32.mrb[0].mxu0
  %440 = vdwg.mxu0
  %v441 = vadd.f32 %v435, %v60
  %v442 = vadd.f32 %v438, %v61
  %v443 = vld [vmem:[%s3 + $0x4] sm:$0x1]
  %v444 = vld [vmem:[%s3 + $0x5] sm:$0x1]
  %v445 = vsel %vm22, %v441, 0.0
  %446 = vadd.xlane.f32.xlu0 %v445
  %v447 = vpop.xlane.xlu0 %446
  %v448 = vsel %vm22, %v442, 0.0
  %449 = vadd.xlane.f32.xlu0 %v448
  %v450 = vpop.xlane.xlu0 %449
  %v451 = vmul.f32 %v447, %v29
  %v452 = vmul.f32 %v450, %v29
  %v453 = vsub.f32 %v441, %v451
  %v454 = vsub.f32 %v442, %v452
  %v455 = vmul.f32 %v453, %v453
  %v456 = vmul.f32 %v454, %v454
  %v457 = vsel %vm22, %v455, 0.0
  %458 = vadd.xlane.f32.xlu0 %v457
  %v459 = vpop.xlane.xlu0 %458
  %v460 = vsel %vm22, %v456, 0.0
  %461 = vadd.xlane.f32.xlu0 %v460
  %v462 = vpop.xlane.xlu0 %461
  %v463 = vmul.f32 %v459, %v29
  %v464 = vmul.f32 %v462, %v29
  %v465 = vadd.f32 %v463, 1e-12
  %v466 = vadd.f32 %v464, 1e-12
  %v467 = vrsqrt.pop %v465
  %v468 = vrsqrt.pop %v466
  %v469 = vmul.f32 %v453, %v467
  %v470 = vmul.f32 %v454, %v468
  %v471 = vlaneseq
  %v472 = vshrl.u32 %v471, 7
  %v473 = vsub.s32 0, %v472
  %v474 = vrot.slane %v443, %v473
  %v475 = vmul.f32 %v469, %v474
  %v476 = vmul.f32 %v470, %v474
  %v477 = vlaneseq
  %v478 = vshrl.u32 %v477, 7
  %v479 = vsub.s32 0, %v478
  %v480 = vrot.slane %v444, %v479
  %v481 = vadd.f32 %v475, %v480
  %v482 = vadd.f32 %v476, %v480
  %v483 = vld [vmem:[%s2 + $0x20] sm:$0xf]
  %v484 = vld [vmem:[%s2 + $0x24] sm:$0xf]
  %v485 = vld [vmem:[%s2 + $0x28] sm:$0xf]
  %v486 = vld [vmem:[%s2 + $0x2c] sm:$0xf]
  %v487 = vpack.c.bf16 %v482, %v481
  %v488 = vld [vmem:[%s3 + $0x6] sm:$0x1]
  %v489 = vlaneseq
  %v490 = vshrl.u32 %v489, 7
  %v491 = vsub.s32 0, %v490
  %v492 = vrot.slane %v488, %v491
  %v497 = vunpack.c.l.b16 %v483
  %v498 = vunpack.c.l.b16 %v484
  %v499 = vunpack.c.l.b16 %v485
  %v500 = vunpack.c.l.b16 %v486
  %v501 = vpack.c.b16 %v498, %v497
  %v502 = vpack.c.b16 %v500, %v499
  %v506 = vsel %vm22, %v487, 0
  %508 = vmatprep.subr.bf16.mxu0 0
  %509 = vmatpush1.bf16.msra.mxu0 %v501
  %510 = vmatprep.subr.bf16.mxu0 0
  %511 = vmatpush1.bf16.msra.mxu0 %v502
  %512 = vmatprep.subr.bf16.mxu0 0
  %513 = vmatpush1.bf16.msra.mxu0 0
  %514 = vmatprep.subr.bf16.mxu0 0
  %515 = vmatpush1.bf16.msra.mxu0 0
  %516 = vmatprep.subr.bf16.mxu0 0
  %517 = vmatpush1.bf16.msra.mxu0 0
  %518 = vmatprep.subr.bf16.mxu0 0
  %519 = vmatpush1.bf16.msra.mxu0 0
  %520 = vmatprep.subr.bf16.mxu0 0
  %521 = vmatpush1.bf16.msra.mxu0 0
  %522 = vmatprep.subr.bf16.mxu0 0
  %523 = vmatpush1.bf16.msra.mxu0 0
  %524 = vmatprep.subr.bf16.mxu0 0
  %525 = vmatpush1.bf16.msra.mxu0 0
  %526 = vmatprep.subr.bf16.mxu0 0
  %527 = vmatpush1.bf16.msra.mxu0 0
  %528 = vmatprep.subr.bf16.mxu0 0
  %529 = vmatpush1.bf16.msra.mxu0 0
  %530 = vmatprep.subr.bf16.mxu0 0
  %531 = vmatpush1.bf16.msra.mxu0 0
  %532 = vmatprep.subr.bf16.mxu0 0
  %533 = vmatpush1.bf16.msra.mxu0 0
  %534 = vmatprep.subr.bf16.mxu0 0
  %535 = vmatpush1.bf16.msra.mxu0 0
  %536 = vmatprep.subr.bf16.mxu0 0
  %537 = vmatpush1.bf16.msra.mxu0 0
  %538 = vmatprep.subr.bf16.mxu0 0
  %539 = vmatpush1.bf16.msra.mxu0 0
  %540 = vmatprep.mubr.bf16.mxu0 0
  %541 = vmatmul.mubr.bf16.gmra.mrb[0].mxu0 %v506
  %v542 = vpop.f32.mrb[0].mxu0
  %v543 = vadd.f32 %v492, %v542
  %v544 = vpop.f32.mrb[0].mxu0
  %v545 = vpop.f32.mrb[0].mxu0
  %v546 = vadd.f32 %v492, %v545
  %v547 = vpop.f32.mrb[0].mxu0
  %548 = vdwg.mxu0
  %v549 = vmul.f32 %v543, 0.5
  %v550 = vmul.f32 %v546, 0.5
  %v551 = vmul.f32 %v543, 0.044715
  %v552 = vmul.f32 %v546, 0.044715
  %v553 = vmul.f32 %v551, %v543
  %v554 = vmul.f32 %v552, %v546
  %v555 = vmul.f32 %v553, %v543
  %v556 = vmul.f32 %v554, %v546
  %v557 = vadd.f32 %v543, %v555
  %v558 = vadd.f32 %v546, %v556
  %v559 = vmul.f32 %v557, 0.7978846
  %v560 = vmul.f32 %v558, 0.7978846
  %v561 = vtanh.pop %v559
  %v562 = vtanh.pop %v560
  %v563 = vadd.f32 %v561, 1.0
  %v564 = vadd.f32 %v562, 1.0
  %v565 = vmul.f32 %v549, %v563
  %v566 = vmul.f32 %v550, %v564
  %v567 = vld [vmem:[%s2 + $0x30] sm:$0xf]
  %v568 = vld [vmem:[%s2 + $0x34] sm:$0xf]
  %v569 = vld [vmem:[%s2 + $0x38] sm:$0xf]
  %v570 = vld [vmem:[%s2 + $0x3c] sm:$0xf]
  %v571 = vld [vmem:[%s2 + $0x40] sm:$0xf]
  %v572 = vld [vmem:[%s2 + $0x44] sm:$0xf]
  %v573 = vld [vmem:[%s2 + $0x48] sm:$0xf]
  %v574 = vld [vmem:[%s2 + $0x4c] sm:$0xf]
  %v575 = vpack.c.bf16 %v566, %v565
  %v576 = vld [vmem:[%s3 + $0x7] sm:$0x1]
  %v577 = vlaneseq
  %v578 = vshrl.u32 %v577, 7
  %v579 = vsub.s32 0, %v578
  %v580 = vrot.slane %v576, %v579
  %v589 = vunpack.c.l.b16 %v567
  %v590 = vunpack.c.l.b16 %v568
  %v591 = vunpack.c.l.b16 %v569
  %v592 = vunpack.c.l.b16 %v570
  %v593 = vunpack.c.l.b16 %v571
  %v594 = vunpack.c.l.b16 %v572
  %v595 = vunpack.c.l.b16 %v573
  %v596 = vunpack.c.l.b16 %v574
  %v597 = vpack.c.b16 %v590, %v589
  %v598 = vpack.c.b16 %v592, %v591
  %v599 = vpack.c.b16 %v594, %v593
  %v600 = vpack.c.b16 %v596, %v595
  %vm605 = vcmask 523264
  %v607 = vsel %vm605, %v575, 0
  %609 = vmatprep.subr.bf16.mxu0 0
  %610 = vmatpush1.bf16.msra.mxu0 %v597
  %611 = vmatprep.subr.bf16.mxu0 0
  %612 = vmatpush1.bf16.msra.mxu0 %v598
  %613 = vmatprep.subr.bf16.mxu0 0
  %614 = vmatpush1.bf16.msra.mxu0 %v599
  %615 = vmatprep.subr.bf16.mxu0 0
  %616 = vmatpush1.bf16.msra.mxu0 %v600
  %617 = vmatprep.subr.bf16.mxu0 0
  %618 = vmatpush1.bf16.msra.mxu0 0
  %619 = vmatprep.subr.bf16.mxu0 0
  %620 = vmatpush1.bf16.msra.mxu0 0
  %621 = vmatprep.subr.bf16.mxu0 0
  %622 = vmatpush1.bf16.msra.mxu0 0
  %623 = vmatprep.subr.bf16.mxu0 0
  %624 = vmatpush1.bf16.msra.mxu0 0
  %625 = vmatprep.subr.bf16.mxu0 0
  %626 = vmatpush1.bf16.msra.mxu0 0
  %627 = vmatprep.subr.bf16.mxu0 0
  %628 = vmatpush1.bf16.msra.mxu0 0
  %629 = vmatprep.subr.bf16.mxu0 0
  %630 = vmatpush1.bf16.msra.mxu0 0
  %631 = vmatprep.subr.bf16.mxu0 0
  %632 = vmatpush1.bf16.msra.mxu0 0
  %633 = vmatprep.subr.bf16.mxu0 0
  %634 = vmatpush1.bf16.msra.mxu0 0
  %635 = vmatprep.subr.bf16.mxu0 0
  %636 = vmatpush1.bf16.msra.mxu0 0
  %637 = vmatprep.subr.bf16.mxu0 0
  %638 = vmatpush1.bf16.msra.mxu0 0
  %639 = vmatprep.subr.bf16.mxu0 0
  %640 = vmatpush1.bf16.msra.mxu0 0
  %641 = vmatprep.mubr.bf16.mxu0 0
  %642 = vmatmul.mubr.bf16.gmra.mrb[0].mxu0 %v607
  %v643 = vpop.f32.mrb[0].mxu0
  %v644 = vadd.f32 %v580, %v643
  %v645 = vpop.f32.mrb[0].mxu0
  %v646 = vpop.f32.mrb[0].mxu0
  %v647 = vadd.f32 %v580, %v646
  %v648 = vpop.f32.mrb[0].mxu0
  %649 = vdwg.mxu0
  %v650 = vadd.f32 %v644, %v481
  %v651 = vadd.f32 %v647, %v482
  %v652 = vld [vmem:[%s3 + $0x8] sm:$0x1]
  %v653 = vld [vmem:[%s3 + $0x9] sm:$0x1]
  %v654 = vsel %vm22, %v650, 0.0
  %655 = vadd.xlane.f32.xlu0 %v654
  %v656 = vpop.xlane.xlu0 %655
  %v657 = vsel %vm22, %v651, 0.0
  %658 = vadd.xlane.f32.xlu0 %v657
  %v659 = vpop.xlane.xlu0 %658
  %v660 = vmul.f32 %v656, %v29
  %v661 = vmul.f32 %v659, %v29
  %v662 = vsub.f32 %v650, %v660
  %v663 = vsub.f32 %v651, %v661
  %v664 = vmul.f32 %v662, %v662
  %v665 = vmul.f32 %v663, %v663
  %v666 = vsel %vm22, %v664, 0.0
  %667 = vadd.xlane.f32.xlu0 %v666
  %v668 = vpop.xlane.xlu0 %667
  %v669 = vsel %vm22, %v665, 0.0
  %670 = vadd.xlane.f32.xlu0 %v669
  %v671 = vpop.xlane.xlu0 %670
  %v672 = vmul.f32 %v668, %v29
  %v673 = vmul.f32 %v671, %v29
  %v674 = vadd.f32 %v672, 1e-12
  %v675 = vadd.f32 %v673, 1e-12
  %v676 = vrsqrt.pop %v674
  %v677 = vrsqrt.pop %v675
  %v678 = vmul.f32 %v662, %v676
  %v679 = vmul.f32 %v663, %v677
  %v680 = vlaneseq
  %v681 = vshrl.u32 %v680, 7
  %v682 = vsub.s32 0, %v681
  %v683 = vrot.slane %v652, %v682
  %v684 = vmul.f32 %v678, %v683
  %v685 = vmul.f32 %v679, %v683
  %v686 = vlaneseq
  %v687 = vshrl.u32 %v686, 7
  %v688 = vsub.s32 0, %v687
  %v689 = vrot.slane %v653, %v688
  %v690 = vadd.f32 %v684, %v689
  %v691 = vadd.f32 %v685, %v689
  %v692 = vld [vmem:[%s2 + $0x50] sm:$0xf]
  %v693 = vld [vmem:[%s2 + $0x54] sm:$0xf]
  %v694 = vld [vmem:[%s2 + $0x58] sm:$0xf]
  %v695 = vld [vmem:[%s2 + $0x5c] sm:$0xf]
  %v696 = vpack.c.bf16 %v691, %v690
  %v697 = vld [vmem:[%s3 + $0xa] sm:$0x1]
  %v698 = vlaneseq
  %v699 = vshrl.u32 %v698, 7
  %v700 = vsub.s32 0, %v699
  %v701 = vrot.slane %v697, %v700
  %v706 = vunpack.c.l.b16 %v692
  %v707 = vunpack.c.l.b16 %v693
  %v708 = vunpack.c.l.b16 %v694
  %v709 = vunpack.c.l.b16 %v695
  %v710 = vpack.c.b16 %v707, %v706
  %v711 = vpack.c.b16 %v709, %v708
  %v715 = vsel %vm22, %v696, 0
  %717 = vmatprep.subr.bf16.mxu0 0
  %718 = vmatpush1.bf16.msra.mxu0 %v710
  %719 = vmatprep.subr.bf16.mxu0 0
  %720 = vmatpush1.bf16.msra.mxu0 %v711
  %721 = vmatprep.subr.bf16.mxu0 0
  %722 = vmatpush1.bf16.msra.mxu0 0
  %723 = vmatprep.subr.bf16.mxu0 0
  %724 = vmatpush1.bf16.msra.mxu0 0
  %725 = vmatprep.subr.bf16.mxu0 0
  %726 = vmatpush1.bf16.msra.mxu0 0
  %727 = vmatprep.subr.bf16.mxu0 0
  %728 = vmatpush1.bf16.msra.mxu0 0
  %729 = vmatprep.subr.bf16.mxu0 0
  %730 = vmatpush1.bf16.msra.mxu0 0
  %731 = vmatprep.subr.bf16.mxu0 0
  %732 = vmatpush1.bf16.msra.mxu0 0
  %733 = vmatprep.subr.bf16.mxu0 0
  %734 = vmatpush1.bf16.msra.mxu0 0
  %735 = vmatprep.subr.bf16.mxu0 0
  %736 = vmatpush1.bf16.msra.mxu0 0
  %737 = vmatprep.subr.bf16.mxu0 0
  %738 = vmatpush1.bf16.msra.mxu0 0
  %739 = vmatprep.subr.bf16.mxu0 0
  %740 = vmatpush1.bf16.msra.mxu0 0
  %741 = vmatprep.subr.bf16.mxu0 0
  %742 = vmatpush1.bf16.msra.mxu0 0
  %743 = vmatprep.subr.bf16.mxu0 0
  %744 = vmatpush1.bf16.msra.mxu0 0
  %745 = vmatprep.subr.bf16.mxu0 0
  %746 = vmatpush1.bf16.msra.mxu0 0
  %747 = vmatprep.subr.bf16.mxu0 0
  %748 = vmatpush1.bf16.msra.mxu0 0
  %749 = vmatprep.mubr.bf16.mxu0 0
  %750 = vmatmul.mubr.bf16.gmra.mrb[0].mxu0 %v715
  %v751 = vpop.f32.mrb[0].mxu0
  %v752 = vadd.f32 %v701, %v751
  %v753 = vpop.f32.mrb[0].mxu0
  %v754 = vpop.f32.mrb[0].mxu0
  %v755 = vadd.f32 %v701, %v754
  %v756 = vpop.f32.mrb[0].mxu0
  %757 = vdwg.mxu0
  %v758 = vpack.c.bf16 %v755, %v752
  %760 = vrot.lane.b32.xlu0 %v758, 96
  %v761 = vpop.permute.xlu0 %760
  %v763 = vsel %vm134, %v758, 0
  %v766 = vsel %vm134, %v761, 0
  %768 = vmatprep.subr.bf16.mxu0 0
  %769 = vmatpush1.bf16.xpose.msra.mxu0 %v766
  %770 = vmatprep.subr.bf16.mxu0 0
  %771 = vmatpush1.bf16.xpose.msra.mxu0 0
  %772 = vmatprep.subr.bf16.mxu0 0
  %773 = vmatpush1.bf16.xpose.msra.mxu0 0
  %774 = vmatprep.subr.bf16.mxu0 0
  %775 = vmatpush1.bf16.xpose.msra.mxu0 0
  %776 = vmatprep.subr.bf16.mxu0 0
  %777 = vmatpush1.bf16.xpose.msra.mxu0 0
  %778 = vmatprep.subr.bf16.mxu0 0
  %779 = vmatpush1.bf16.xpose.msra.mxu0 0
  %780 = vmatprep.subr.bf16.mxu0 0
  %781 = vmatpush1.bf16.xpose.msra.mxu0 0
  %782 = vmatprep.subr.bf16.mxu0 0
  %783 = vmatpush1.bf16.xpose.msra.mxu0 0
  %784 = vmatprep.subr.bf16.mxu0 0
  %785 = vmatpush1.bf16.xpose.msra.mxu0 0
  %786 = vmatprep.subr.bf16.mxu0 0
  %787 = vmatpush1.bf16.xpose.msra.mxu0 0
  %788 = vmatprep.subr.bf16.mxu0 0
  %789 = vmatpush1.bf16.xpose.msra.mxu0 0
  %790 = vmatprep.subr.bf16.mxu0 0
  %791 = vmatpush1.bf16.xpose.msra.mxu0 0
  %792 = vmatprep.subr.bf16.mxu0 0
  %793 = vmatpush1.bf16.xpose.msra.mxu0 0
  %794 = vmatprep.subr.bf16.mxu0 0
  %795 = vmatpush1.bf16.xpose.msra.mxu0 0
  %796 = vmatprep.subr.bf16.mxu0 0
  %797 = vmatpush1.bf16.xpose.msra.mxu0 0
  %798 = vmatprep.subr.bf16.mxu0 0
  %799 = vmatpush1.bf16.xpose.msra.mxu0 0
  %800 = vmatprep.mubr.bf16.mxu0 0
  %801 = vmatmul.mubr.bf16.gmra.mrb[0].mxu0 %v763
  %v802 = vpop.f32.mrb[0].mxu0
  %v803 = vadd.f32 0.0, %v802
  %v804 = vpop.f32.mrb[0].mxu0
  %v805 = vpop.f32.mrb[0].mxu0
  %v806 = vadd.f32 0.0, %v805
  %v807 = vpop.f32.mrb[0].mxu0
  %808 = vdwg.mxu0
  %v809 = vmul.f32 %v803, 0.25
  %v810 = vmul.f32 %v806, 0.25
  %v811 = vadd.f32 %v809, %v62
  %v812 = vadd.f32 %v810, %v63
  %v813 = vmul.f32 %v811, 1.442695
  %v814 = vpow.pop %v813
  %v815 = vmul.f32 %v812, 1.442695
  %v816 = vpow.pop %v815
  %v817 = vsel %vm134, %v814, 0.0
  %818 = vadd.xlane.f32.xlu0 %v817
  %v819 = vpop.xlane.xlu0 %818
  %v820 = vsel %vm134, %v816, 0.0
  %821 = vadd.xlane.f32.xlu0 %v820
  %v822 = vpop.xlane.xlu0 %821
  %v823 = vrcp.pop %v819
  %v824 = vrcp.pop %v822
  %v825 = vmul.f32 %v814, %v823
  %v826 = vmul.f32 %v816, %v824
  %v827 = vpack.c.bf16 %v826, %v825
  %828 = vrot.lane.b32.xlu0 %v758, 64
  %v829 = vpop.permute.xlu0 %828
  %v832 = vsel %vm134, %v827, 0
  %834 = vmatprep.subr.bf16.mxu0 0
  %835 = vmatpush1.bf16.msra.mxu0 %v829
  %836 = vmatprep.subr.bf16.mxu0 0
  %837 = vmatpush1.bf16.msra.mxu0 0
  %838 = vmatprep.subr.bf16.mxu0 0
  %839 = vmatpush1.bf16.msra.mxu0 0
  %840 = vmatprep.subr.bf16.mxu0 0
  %841 = vmatpush1.bf16.msra.mxu0 0
  %842 = vmatprep.subr.bf16.mxu0 0
  %843 = vmatpush1.bf16.msra.mxu0 0
  %844 = vmatprep.subr.bf16.mxu0 0
  %845 = vmatpush1.bf16.msra.mxu0 0
  %846 = vmatprep.subr.bf16.mxu0 0
  %847 = vmatpush1.bf16.msra.mxu0 0
  %848 = vmatprep.subr.bf16.mxu0 0
  %849 = vmatpush1.bf16.msra.mxu0 0
  %850 = vmatprep.subr.bf16.mxu0 0
  %851 = vmatpush1.bf16.msra.mxu0 0
  %852 = vmatprep.subr.bf16.mxu0 0
  %853 = vmatpush1.bf16.msra.mxu0 0
  %854 = vmatprep.subr.bf16.mxu0 0
  %855 = vmatpush1.bf16.msra.mxu0 0
  %856 = vmatprep.subr.bf16.mxu0 0
  %857 = vmatpush1.bf16.msra.mxu0 0
  %858 = vmatprep.subr.bf16.mxu0 0
  %859 = vmatpush1.bf16.msra.mxu0 0
  %860 = vmatprep.subr.bf16.mxu0 0
  %861 = vmatpush1.bf16.msra.mxu0 0
  %862 = vmatprep.subr.bf16.mxu0 0
  %863 = vmatpush1.bf16.msra.mxu0 0
  %864 = vmatprep.subr.bf16.mxu0 0
  %865 = vmatpush1.bf16.msra.mxu0 0
  %866 = vmatprep.mubr.bf16.mxu0 0
  %867 = vmatmul.mubr.bf16.gmra.mrb[0].mxu0 %v832
  %v868 = vpop.f32.mrb[0].mxu0
  %v869 = vadd.f32 0.0, %v868
  %v870 = vpop.f32.mrb[0].mxu0
  %v871 = vpop.f32.mrb[0].mxu0
  %v872 = vadd.f32 0.0, %v871
  %v873 = vpop.f32.mrb[0].mxu0
  %874 = vdwg.mxu0
  %875 = vrot.lane.b32.xlu0 %v758, 112
  %v876 = vpop.permute.xlu0 %875
  %877 = vrot.lane.b32.xlu0 %v758, 80
  %v878 = vpop.permute.xlu0 %877
  %v880 = vsel %vm134, %v876, 0
  %v883 = vsel %vm134, %v878, 0
  %885 = vmatprep.subr.bf16.mxu0 0
  %886 = vmatpush1.bf16.xpose.msra.mxu0 %v883
  %887 = vmatprep.subr.bf16.mxu0 0
  %888 = vmatpush1.bf16.xpose.msra.mxu0 0
  %889 = vmatprep.subr.bf16.mxu0 0
  %890 = vmatpush1.bf16.xpose.msra.mxu0 0
  %891 = vmatprep.subr.bf16.mxu0 0
  %892 = vmatpush1.bf16.xpose.msra.mxu0 0
  %893 = vmatprep.subr.bf16.mxu0 0
  %894 = vmatpush1.bf16.xpose.msra.mxu0 0
  %895 = vmatprep.subr.bf16.mxu0 0
  %896 = vmatpush1.bf16.xpose.msra.mxu0 0
  %897 = vmatprep.subr.bf16.mxu0 0
  %898 = vmatpush1.bf16.xpose.msra.mxu0 0
  %899 = vmatprep.subr.bf16.mxu0 0
  %900 = vmatpush1.bf16.xpose.msra.mxu0 0
  %901 = vmatprep.subr.bf16.mxu0 0
  %902 = vmatpush1.bf16.xpose.msra.mxu0 0
  %903 = vmatprep.subr.bf16.mxu0 0
  %904 = vmatpush1.bf16.xpose.msra.mxu0 0
  %905 = vmatprep.subr.bf16.mxu0 0
  %906 = vmatpush1.bf16.xpose.msra.mxu0 0
  %907 = vmatprep.subr.bf16.mxu0 0
  %908 = vmatpush1.bf16.xpose.msra.mxu0 0
  %909 = vmatprep.subr.bf16.mxu0 0
  %910 = vmatpush1.bf16.xpose.msra.mxu0 0
  %911 = vmatprep.subr.bf16.mxu0 0
  %912 = vmatpush1.bf16.xpose.msra.mxu0 0
  %913 = vmatprep.subr.bf16.mxu0 0
  %914 = vmatpush1.bf16.xpose.msra.mxu0 0
  %915 = vmatprep.subr.bf16.mxu0 0
  %916 = vmatpush1.bf16.xpose.msra.mxu0 0
  %917 = vmatprep.mubr.bf16.mxu0 0
  %918 = vmatmul.mubr.bf16.gmra.mrb[0].mxu0 %v880
  %v919 = vpop.f32.mrb[0].mxu0
  %v920 = vadd.f32 0.0, %v919
  %v921 = vpop.f32.mrb[0].mxu0
  %v922 = vpop.f32.mrb[0].mxu0
  %v923 = vadd.f32 0.0, %v922
  %v924 = vpop.f32.mrb[0].mxu0
  %925 = vdwg.mxu0
  %v926 = vmul.f32 %v920, 0.25
  %v927 = vmul.f32 %v923, 0.25
  %v928 = vadd.f32 %v926, %v62
  %v929 = vadd.f32 %v927, %v63
  %v930 = vmul.f32 %v928, 1.442695
  %v931 = vpow.pop %v930
  %v932 = vmul.f32 %v929, 1.442695
  %v933 = vpow.pop %v932
  %v934 = vsel %vm134, %v931, 0.0
  %935 = vadd.xlane.f32.xlu0 %v934
  %v936 = vpop.xlane.xlu0 %935
  %v937 = vsel %vm134, %v933, 0.0
  %938 = vadd.xlane.f32.xlu0 %v937
  %v939 = vpop.xlane.xlu0 %938
  %v940 = vrcp.pop %v936
  %v941 = vrcp.pop %v939
  %v942 = vmul.f32 %v931, %v940
  %v943 = vmul.f32 %v933, %v941
  %v944 = vpack.c.bf16 %v943, %v942
  %945 = vrot.lane.b32.xlu0 %v758, 48
  %v946 = vpop.permute.xlu0 %945
  %v949 = vsel %vm134, %v944, 0
  %951 = vmatprep.subr.bf16.mxu0 0
  %952 = vmatpush1.bf16.msra.mxu0 %v946
  %953 = vmatprep.subr.bf16.mxu0 0
  %954 = vmatpush1.bf16.msra.mxu0 0
  %955 = vmatprep.subr.bf16.mxu0 0
  %956 = vmatpush1.bf16.msra.mxu0 0
  %957 = vmatprep.subr.bf16.mxu0 0
  %958 = vmatpush1.bf16.msra.mxu0 0
  %959 = vmatprep.subr.bf16.mxu0 0
  %960 = vmatpush1.bf16.msra.mxu0 0
  %961 = vmatprep.subr.bf16.mxu0 0
  %962 = vmatpush1.bf16.msra.mxu0 0
  %963 = vmatprep.subr.bf16.mxu0 0
  %964 = vmatpush1.bf16.msra.mxu0 0
  %965 = vmatprep.subr.bf16.mxu0 0
  %966 = vmatpush1.bf16.msra.mxu0 0
  %967 = vmatprep.subr.bf16.mxu0 0
  %968 = vmatpush1.bf16.msra.mxu0 0
  %969 = vmatprep.subr.bf16.mxu0 0
  %970 = vmatpush1.bf16.msra.mxu0 0
  %971 = vmatprep.subr.bf16.mxu0 0
  %972 = vmatpush1.bf16.msra.mxu0 0
  %973 = vmatprep.subr.bf16.mxu0 0
  %974 = vmatpush1.bf16.msra.mxu0 0
  %975 = vmatprep.subr.bf16.mxu0 0
  %976 = vmatpush1.bf16.msra.mxu0 0
  %977 = vmatprep.subr.bf16.mxu0 0
  %978 = vmatpush1.bf16.msra.mxu0 0
  %979 = vmatprep.subr.bf16.mxu0 0
  %980 = vmatpush1.bf16.msra.mxu0 0
  %981 = vmatprep.subr.bf16.mxu0 0
  %982 = vmatpush1.bf16.msra.mxu0 0
  %983 = vmatprep.mubr.bf16.mxu0 0
  %984 = vmatmul.mubr.bf16.gmra.mrb[0].mxu0 %v949
  %v985 = vpop.f32.mrb[0].mxu0
  %v986 = vadd.f32 0.0, %v985
  %v987 = vpop.f32.mrb[0].mxu0
  %v988 = vpop.f32.mrb[0].mxu0
  %v989 = vadd.f32 0.0, %v988
  %v990 = vpop.f32.mrb[0].mxu0
  %991 = vdwg.mxu0
  %994 = vrot.lane.b32.xlu0 %v986, 16
  %v995 = vpop.permute.xlu0 %994
  %996 = vrot.lane.b32.xlu0 %v989, 16
  %v997 = vpop.permute.xlu0 %996
  %v1000 = vsel %vm134, %v869, %v995
  %v1001 = vsel %vm134, %v872, %v997
  %v1002 = vld [vmem:[%s2 + $0x60] sm:$0xf]
  %v1003 = vld [vmem:[%s2 + $0x64] sm:$0xf]
  %v1004 = vld [vmem:[%s2 + $0x68] sm:$0xf]
  %v1005 = vld [vmem:[%s2 + $0x6c] sm:$0xf]
  %v1006 = vpack.c.bf16 %v1001, %v1000
  %v1007 = vld [vmem:[%s3 + $0xb] sm:$0x1]
  %v1008 = vlaneseq
  %v1009 = vshrl.u32 %v1008, 7
  %v1010 = vsub.s32 0, %v1009
  %v1011 = vrot.slane %v1007, %v1010
  %v1016 = vunpack.c.l.b16 %v1002
  %v1017 = vunpack.c.l.b16 %v1003
  %v1018 = vunpack.c.l.b16 %v1004
  %v1019 = vunpack.c.l.b16 %v1005
  %v1020 = vpack.c.b16 %v1017, %v1016
  %v1021 = vpack.c.b16 %v1019, %v1018
  %v1025 = vsel %vm22, %v1006, 0
  %1027 = vmatprep.subr.bf16.mxu0 0
  %1028 = vmatpush1.bf16.msra.mxu0 %v1020
  %1029 = vmatprep.subr.bf16.mxu0 0
  %1030 = vmatpush1.bf16.msra.mxu0 %v1021
  %1031 = vmatprep.subr.bf16.mxu0 0
  %1032 = vmatpush1.bf16.msra.mxu0 0
  %1033 = vmatprep.subr.bf16.mxu0 0
  %1034 = vmatpush1.bf16.msra.mxu0 0
  %1035 = vmatprep.subr.bf16.mxu0 0
  %1036 = vmatpush1.bf16.msra.mxu0 0
  %1037 = vmatprep.subr.bf16.mxu0 0
  %1038 = vmatpush1.bf16.msra.mxu0 0
  %1039 = vmatprep.subr.bf16.mxu0 0
  %1040 = vmatpush1.bf16.msra.mxu0 0
  %1041 = vmatprep.subr.bf16.mxu0 0
  %1042 = vmatpush1.bf16.msra.mxu0 0
  %1043 = vmatprep.subr.bf16.mxu0 0
  %1044 = vmatpush1.bf16.msra.mxu0 0
  %1045 = vmatprep.subr.bf16.mxu0 0
  %1046 = vmatpush1.bf16.msra.mxu0 0
  %1047 = vmatprep.subr.bf16.mxu0 0
  %1048 = vmatpush1.bf16.msra.mxu0 0
  %1049 = vmatprep.subr.bf16.mxu0 0
  %1050 = vmatpush1.bf16.msra.mxu0 0
  %1051 = vmatprep.subr.bf16.mxu0 0
  %1052 = vmatpush1.bf16.msra.mxu0 0
  %1053 = vmatprep.subr.bf16.mxu0 0
  %1054 = vmatpush1.bf16.msra.mxu0 0
  %1055 = vmatprep.subr.bf16.mxu0 0
  %1056 = vmatpush1.bf16.msra.mxu0 0
  %1057 = vmatprep.subr.bf16.mxu0 0
  %1058 = vmatpush1.bf16.msra.mxu0 0
  %1059 = vmatprep.mubr.bf16.mxu0 0
  %1060 = vmatmul.mubr.bf16.gmra.mrb[0].mxu0 %v1025
  %v1061 = vpop.f32.mrb[0].mxu0
  %v1062 = vadd.f32 %v1011, %v1061
  %v1063 = vpop.f32.mrb[0].mxu0
  %v1064 = vpop.f32.mrb[0].mxu0
  %v1065 = vadd.f32 %v1011, %v1064
  %v1066 = vpop.f32.mrb[0].mxu0
  %1067 = vdwg.mxu0
  %v1068 = vadd.f32 %v1062, %v690
  %v1069 = vadd.f32 %v1065, %v691
  %v1070 = vld [vmem:[%s3 + $0xc] sm:$0x1]
  %v1071 = vld [vmem:[%s3 + $0xd] sm:$0x1]
  %v1072 = vsel %vm22, %v1068, 0.0
  %1073 = vadd.xlane.f32.xlu0 %v1072
  %v1074 = vpop.xlane.xlu0 %1073
  %v1075 = vsel %vm22, %v1069, 0.0
  %1076 = vadd.xlane.f32.xlu0 %v1075
  %v1077 = vpop.xlane.xlu0 %1076
  %v1078 = vmul.f32 %v1074, %v29
  %v1079 = vmul.f32 %v1077, %v29
  %v1080 = vsub.f32 %v1068, %v1078
  %v1081 = vsub.f32 %v1069, %v1079
  %v1082 = vmul.f32 %v1080, %v1080
  %v1083 = vmul.f32 %v1081, %v1081
  %v1084 = vsel %vm22, %v1082, 0.0
  %1085 = vadd.xlane.f32.xlu0 %v1084
  %v1086 = vpop.xlane.xlu0 %1085
  %v1087 = vsel %vm22, %v1083, 0.0
  %1088 = vadd.xlane.f32.xlu0 %v1087
  %v1089 = vpop.xlane.xlu0 %1088
  %v1090 = vmul.f32 %v1086, %v29
  %v1091 = vmul.f32 %v1089, %v29
  %v1092 = vadd.f32 %v1090, 1e-12
  %v1093 = vadd.f32 %v1091, 1e-12
  %v1094 = vrsqrt.pop %v1092
  %v1095 = vrsqrt.pop %v1093
  %v1096 = vmul.f32 %v1080, %v1094
  %v1097 = vmul.f32 %v1081, %v1095
  %v1098 = vlaneseq
  %v1099 = vshrl.u32 %v1098, 7
  %v1100 = vsub.s32 0, %v1099
  %v1101 = vrot.slane %v1070, %v1100
  %v1102 = vmul.f32 %v1096, %v1101
  %v1103 = vmul.f32 %v1097, %v1101
  %v1104 = vlaneseq
  %v1105 = vshrl.u32 %v1104, 7
  %v1106 = vsub.s32 0, %v1105
  %v1107 = vrot.slane %v1071, %v1106
  %v1108 = vadd.f32 %v1102, %v1107
  %v1109 = vadd.f32 %v1103, %v1107
  %v1110 = vld [vmem:[%s2 + $0x70] sm:$0xf]
  %v1111 = vld [vmem:[%s2 + $0x74] sm:$0xf]
  %v1112 = vld [vmem:[%s2 + $0x78] sm:$0xf]
  %v1113 = vld [vmem:[%s2 + $0x7c] sm:$0xf]
  %v1114 = vpack.c.bf16 %v1109, %v1108
  %v1115 = vld [vmem:[%s3 + $0xe] sm:$0x1]
  %v1116 = vlaneseq
  %v1117 = vshrl.u32 %v1116, 7
  %v1118 = vsub.s32 0, %v1117
  %v1119 = vrot.slane %v1115, %v1118
  %v1124 = vunpack.c.l.b16 %v1110
  %v1125 = vunpack.c.l.b16 %v1111
  %v1126 = vunpack.c.l.b16 %v1112
  %v1127 = vunpack.c.l.b16 %v1113
  %v1128 = vpack.c.b16 %v1125, %v1124
  %v1129 = vpack.c.b16 %v1127, %v1126
  %v1133 = vsel %vm22, %v1114, 0
  %1135 = vmatprep.subr.bf16.mxu0 0
  %1136 = vmatpush1.bf16.msra.mxu0 %v1128
  %1137 = vmatprep.subr.bf16.mxu0 0
  %1138 = vmatpush1.bf16.msra.mxu0 %v1129
  %1139 = vmatprep.subr.bf16.mxu0 0
  %1140 = vmatpush1.bf16.msra.mxu0 0
  %1141 = vmatprep.subr.bf16.mxu0 0
  %1142 = vmatpush1.bf16.msra.mxu0 0
  %1143 = vmatprep.subr.bf16.mxu0 0
  %1144 = vmatpush1.bf16.msra.mxu0 0
  %1145 = vmatprep.subr.bf16.mxu0 0
  %1146 = vmatpush1.bf16.msra.mxu0 0
  %1147 = vmatprep.subr.bf16.mxu0 0
  %1148 = vmatpush1.bf16.msra.mxu0 0
  %1149 = vmatprep.subr.bf16.mxu0 0
  %1150 = vmatpush1.bf16.msra.mxu0 0
  %1151 = vmatprep.subr.bf16.mxu0 0
  %1152 = vmatpush1.bf16.msra.mxu0 0
  %1153 = vmatprep.subr.bf16.mxu0 0
  %1154 = vmatpush1.bf16.msra.mxu0 0
  %1155 = vmatprep.subr.bf16.mxu0 0
  %1156 = vmatpush1.bf16.msra.mxu0 0
  %1157 = vmatprep.subr.bf16.mxu0 0
  %1158 = vmatpush1.bf16.msra.mxu0 0
  %1159 = vmatprep.subr.bf16.mxu0 0
  %1160 = vmatpush1.bf16.msra.mxu0 0
  %1161 = vmatprep.subr.bf16.mxu0 0
  %1162 = vmatpush1.bf16.msra.mxu0 0
  %1163 = vmatprep.subr.bf16.mxu0 0
  %1164 = vmatpush1.bf16.msra.mxu0 0
  %1165 = vmatprep.subr.bf16.mxu0 0
  %1166 = vmatpush1.bf16.msra.mxu0 0
  %1167 = vmatprep.mubr.bf16.mxu0 0
  %1168 = vmatmul.mubr.bf16.gmra.mrb[0].mxu0 %v1133
  %v1169 = vpop.f32.mrb[0].mxu0
  %v1170 = vadd.f32 %v1119, %v1169
  %v1171 = vpop.f32.mrb[0].mxu0
  %v1172 = vpop.f32.mrb[0].mxu0
  %v1173 = vadd.f32 %v1119, %v1172
  %v1174 = vpop.f32.mrb[0].mxu0
  %1175 = vdwg.mxu0
  %v1176 = vmul.f32 %v1170, 0.5
  %v1177 = vmul.f32 %v1173, 0.5
  %v1178 = vmul.f32 %v1170, 0.044715
  %v1179 = vmul.f32 %v1173, 0.044715
  %v1180 = vmul.f32 %v1178, %v1170
  %v1181 = vmul.f32 %v1179, %v1173
  %v1182 = vmul.f32 %v1180, %v1170
  %v1183 = vmul.f32 %v1181, %v1173
  %v1184 = vadd.f32 %v1170, %v1182
  %v1185 = vadd.f32 %v1173, %v1183
  %v1186 = vmul.f32 %v1184, 0.7978846
  %v1187 = vmul.f32 %v1185, 0.7978846
  %v1188 = vtanh.pop %v1186
  %v1189 = vtanh.pop %v1187
  %v1190 = vadd.f32 %v1188, 1.0
  %v1191 = vadd.f32 %v1189, 1.0
  %v1192 = vmul.f32 %v1176, %v1190
  %v1193 = vmul.f32 %v1177, %v1191
  %v1194 = vld [vmem:[%s2 + $0x80] sm:$0xf]
  %v1195 = vld [vmem:[%s2 + $0x84] sm:$0xf]
  %v1196 = vld [vmem:[%s2 + $0x88] sm:$0xf]
  %v1197 = vld [vmem:[%s2 + $0x8c] sm:$0xf]
  %v1198 = vld [vmem:[%s2 + $0x90] sm:$0xf]
  %v1199 = vld [vmem:[%s2 + $0x94] sm:$0xf]
  %v1200 = vld [vmem:[%s2 + $0x98] sm:$0xf]
  %v1201 = vld [vmem:[%s2 + $0x9c] sm:$0xf]
  %v1202 = vpack.c.bf16 %v1193, %v1192
  %v1203 = vld [vmem:[%s3 + $0xf] sm:$0x1]
  %v1204 = vlaneseq
  %v1205 = vshrl.u32 %v1204, 7
  %v1206 = vsub.s32 0, %v1205
  %v1207 = vrot.slane %v1203, %v1206
  %v1216 = vunpack.c.l.b16 %v1194
  %v1217 = vunpack.c.l.b16 %v1195
  %v1218 = vunpack.c.l.b16 %v1196
  %v1219 = vunpack.c.l.b16 %v1197
  %v1220 = vunpack.c.l.b16 %v1198
  %v1221 = vunpack.c.l.b16 %v1199
  %v1222 = vunpack.c.l.b16 %v1200
  %v1223 = vunpack.c.l.b16 %v1201
  %v1224 = vpack.c.b16 %v1217, %v1216
  %v1225 = vpack.c.b16 %v1219, %v1218
  %v1226 = vpack.c.b16 %v1221, %v1220
  %v1227 = vpack.c.b16 %v1223, %v1222
  %v1233 = vsel %vm605, %v1202, 0
  %1235 = vmatprep.subr.bf16.mxu0 0
  %1236 = vmatpush1.bf16.msra.mxu0 %v1224
  %1237 = vmatprep.subr.bf16.mxu0 0
  %1238 = vmatpush1.bf16.msra.mxu0 %v1225
  %1239 = vmatprep.subr.bf16.mxu0 0
  %1240 = vmatpush1.bf16.msra.mxu0 %v1226
  %1241 = vmatprep.subr.bf16.mxu0 0
  %1242 = vmatpush1.bf16.msra.mxu0 %v1227
  %1243 = vmatprep.subr.bf16.mxu0 0
  %1244 = vmatpush1.bf16.msra.mxu0 0
  %1245 = vmatprep.subr.bf16.mxu0 0
  %1246 = vmatpush1.bf16.msra.mxu0 0
  %1247 = vmatprep.subr.bf16.mxu0 0
  %1248 = vmatpush1.bf16.msra.mxu0 0
  %1249 = vmatprep.subr.bf16.mxu0 0
  %1250 = vmatpush1.bf16.msra.mxu0 0
  %1251 = vmatprep.subr.bf16.mxu0 0
  %1252 = vmatpush1.bf16.msra.mxu0 0
  %1253 = vmatprep.subr.bf16.mxu0 0
  %1254 = vmatpush1.bf16.msra.mxu0 0
  %1255 = vmatprep.subr.bf16.mxu0 0
  %1256 = vmatpush1.bf16.msra.mxu0 0
  %1257 = vmatprep.subr.bf16.mxu0 0
  %1258 = vmatpush1.bf16.msra.mxu0 0
  %1259 = vmatprep.subr.bf16.mxu0 0
  %1260 = vmatpush1.bf16.msra.mxu0 0
  %1261 = vmatprep.subr.bf16.mxu0 0
  %1262 = vmatpush1.bf16.msra.mxu0 0
  %1263 = vmatprep.subr.bf16.mxu0 0
  %1264 = vmatpush1.bf16.msra.mxu0 0
  %1265 = vmatprep.subr.bf16.mxu0 0
  %1266 = vmatpush1.bf16.msra.mxu0 0
  %1267 = vmatprep.mubr.bf16.mxu0 0
  %1268 = vmatmul.mubr.bf16.gmra.mrb[0].mxu0 %v1233
  %v1269 = vpop.f32.mrb[0].mxu0
  %v1270 = vadd.f32 %v1207, %v1269
  %v1271 = vpop.f32.mrb[0].mxu0
  %v1272 = vpop.f32.mrb[0].mxu0
  %v1273 = vadd.f32 %v1207, %v1272
  %v1274 = vpop.f32.mrb[0].mxu0
  %1275 = vdwg.mxu0
  %v1276 = vadd.f32 %v1270, %v1108
  %v1277 = vadd.f32 %v1273, %v1109
  %v1278 = vld [vmem:[%s3 + $0x10] sm:$0x1]
  %v1279 = vld [vmem:[%s3 + $0x11] sm:$0x1]
  %v1280 = vsel %vm22, %v1276, 0.0
  %1281 = vadd.xlane.f32.xlu0 %v1280
  %v1282 = vpop.xlane.xlu0 %1281
  %v1283 = vsel %vm22, %v1277, 0.0
  %1284 = vadd.xlane.f32.xlu0 %v1283
  %v1285 = vpop.xlane.xlu0 %1284
  %v1286 = vmul.f32 %v1282, %v29
  %v1287 = vmul.f32 %v1285, %v29
  %v1288 = vsub.f32 %v1276, %v1286
  %v1289 = vsub.f32 %v1277, %v1287
  %v1290 = vmul.f32 %v1288, %v1288
  %v1291 = vmul.f32 %v1289, %v1289
  %v1292 = vsel %vm22, %v1290, 0.0
  %1293 = vadd.xlane.f32.xlu0 %v1292
  %v1294 = vpop.xlane.xlu0 %1293
  %v1295 = vsel %vm22, %v1291, 0.0
  %1296 = vadd.xlane.f32.xlu0 %v1295
  %v1297 = vpop.xlane.xlu0 %1296
  %v1298 = vmul.f32 %v1294, %v29
  %v1299 = vmul.f32 %v1297, %v29
  %v1300 = vadd.f32 %v1298, 1e-12
  %v1301 = vadd.f32 %v1299, 1e-12
  %v1302 = vrsqrt.pop %v1300
  %v1303 = vrsqrt.pop %v1301
  %v1304 = vmul.f32 %v1288, %v1302
  %v1305 = vmul.f32 %v1289, %v1303
  %v1306 = vlaneseq
  %v1307 = vshrl.u32 %v1306, 7
  %v1308 = vsub.s32 0, %v1307
  %v1309 = vrot.slane %v1278, %v1308
  %v1310 = vmul.f32 %v1304, %v1309
  %v1311 = vmul.f32 %v1305, %v1309
  %v1312 = vlaneseq
  %v1313 = vshrl.u32 %v1312, 7
  %v1314 = vsub.s32 0, %v1313
  %v1315 = vrot.slane %v1279, %v1314
  %v1316 = vadd.f32 %v1310, %v1315
  %v1317 = vadd.f32 %v1311, %v1315
  %v1318 = vld [vmem:[%s2 + $0xa0] sm:$0xf]
  %v1319 = vld [vmem:[%s2 + $0xa4] sm:$0xf]
  %v1320 = vld [vmem:[%s2 + $0xa8] sm:$0xf]
  %v1321 = vld [vmem:[%s2 + $0xac] sm:$0xf]
  %v1322 = vpack.c.bf16 %v1317, %v1316
  %v1323 = vld [vmem:[%s3 + $0x12] sm:$0x1]
  %v1324 = vlaneseq
  %v1325 = vshrl.u32 %v1324, 7
  %v1326 = vsub.s32 0, %v1325
  %v1327 = vrot.slane %v1323, %v1326
  %v1332 = vunpack.c.l.b16 %v1318
  %v1333 = vunpack.c.l.b16 %v1319
  %v1334 = vunpack.c.l.b16 %v1320
  %v1335 = vunpack.c.l.b16 %v1321
  %v1336 = vpack.c.b16 %v1333, %v1332
  %v1337 = vpack.c.b16 %v1335, %v1334
  %v1341 = vsel %vm22, %v1322, 0
  %1343 = vmatprep.subr.bf16.mxu0 0
  %1344 = vmatpush1.bf16.msra.mxu0 %v1336
  %1345 = vmatprep.subr.bf16.mxu0 0
  %1346 = vmatpush1.bf16.msra.mxu0 %v1337
  %1347 = vmatprep.subr.bf16.mxu0 0
  %1348 = vmatpush1.bf16.msra.mxu0 0
  %1349 = vmatprep.subr.bf16.mxu0 0
  %1350 = vmatpush1.bf16.msra.mxu0 0
  %1351 = vmatprep.subr.bf16.mxu0 0
  %1352 = vmatpush1.bf16.msra.mxu0 0
  %1353 = vmatprep.subr.bf16.mxu0 0
  %1354 = vmatpush1.bf16.msra.mxu0 0
  %1355 = vmatprep.subr.bf16.mxu0 0
  %1356 = vmatpush1.bf16.msra.mxu0 0
  %1357 = vmatprep.subr.bf16.mxu0 0
  %1358 = vmatpush1.bf16.msra.mxu0 0
  %1359 = vmatprep.subr.bf16.mxu0 0
  %1360 = vmatpush1.bf16.msra.mxu0 0
  %1361 = vmatprep.subr.bf16.mxu0 0
  %1362 = vmatpush1.bf16.msra.mxu0 0
  %1363 = vmatprep.subr.bf16.mxu0 0
  %1364 = vmatpush1.bf16.msra.mxu0 0
  %1365 = vmatprep.subr.bf16.mxu0 0
  %1366 = vmatpush1.bf16.msra.mxu0 0
  %1367 = vmatprep.subr.bf16.mxu0 0
  %1368 = vmatpush1.bf16.msra.mxu0 0
  %1369 = vmatprep.subr.bf16.mxu0 0
  %1370 = vmatpush1.bf16.msra.mxu0 0
  %1371 = vmatprep.subr.bf16.mxu0 0
  %1372 = vmatpush1.bf16.msra.mxu0 0
  %1373 = vmatprep.subr.bf16.mxu0 0
  %1374 = vmatpush1.bf16.msra.mxu0 0
  %1375 = vmatprep.mubr.bf16.mxu0 0
  %1376 = vmatmul.mubr.bf16.gmra.mrb[0].mxu0 %v1341
  %v1377 = vpop.f32.mrb[0].mxu0
  %v1378 = vadd.f32 %v1327, %v1377
  %v1379 = vpop.f32.mrb[0].mxu0
  %v1380 = vpop.f32.mrb[0].mxu0
  %v1381 = vadd.f32 %v1327, %v1380
  %v1382 = vpop.f32.mrb[0].mxu0
  %1383 = vdwg.mxu0
  %v1384 = vtanh.pop %v1378
  %v1385 = vtanh.pop %v1381
  %v1386 = vld [vmem:[%s2 + $0xb0] sm:$0xf]
  %v1387 = vld [vmem:[%s2 + $0xb4] sm:$0xf]
  %v1388 = vld [vmem:[%s2 + $0xb8] sm:$0xf]
  %v1389 = vld [vmem:[%s2 + $0xbc] sm:$0xf]
  %v1390 = vpack.c.bf16 %v1385, %v1384
  %v1391 = vld [vmem:[%s3 + $0x13] sm:$0x1]
  %v1392 = vlaneseq
  %v1393 = vshrl.u32 %v1392, 7
  %v1394 = vsub.s32 0, %v1393
  %v1395 = vrot.slane %v1391, %v1394
  %v1400 = vunpack.c.l.b16 %v1386
  %v1401 = vunpack.c.l.b16 %v1387
  %v1402 = vunpack.c.l.b16 %v1388
  %v1403 = vunpack.c.l.b16 %v1389
  %v1404 = vpack.c.b16 %v1401, %v1400
  %v1405 = vpack.c.b16 %v1403, %v1402
  %v1409 = vsel %vm22, %v1390, 0
  %1411 = vmatprep.subr.bf16.mxu0 0
  %1412 = vmatpush1.bf16.msra.mxu0 %v1404
  %1413 = vmatprep.subr.bf16.mxu0 0
  %1414 = vmatpush1.bf16.msra.mxu0 %v1405
  %1415 = vmatprep.subr.bf16.mxu0 0
  %1416 = vmatpush1.bf16.msra.mxu0 0
  %1417 = vmatprep.subr.bf16.mxu0 0
  %1418 = vmatpush1.bf16.msra.mxu0 0
  %1419 = vmatprep.subr.bf16.mxu0 0
  %1420 = vmatpush1.bf16.msra.mxu0 0
  %1421 = vmatprep.subr.bf16.mxu0 0
  %1422 = vmatpush1.bf16.msra.mxu0 0
  %1423 = vmatprep.subr.bf16.mxu0 0
  %1424 = vmatpush1.bf16.msra.mxu0 0
  %1425 = vmatprep.subr.bf16.mxu0 0
  %1426 = vmatpush1.bf16.msra.mxu0 0
  %1427 = vmatprep.subr.bf16.mxu0 0
  %1428 = vmatpush1.bf16.msra.mxu0 0
  %1429 = vmatprep.subr.bf16.mxu0 0
  %1430 = vmatpush1.bf16.msra.mxu0 0
  %1431 = vmatprep.subr.bf16.mxu0 0
  %1432 = vmatpush1.bf16.msra.mxu0 0
  %1433 = vmatprep.subr.bf16.mxu0 0
  %1434 = vmatpush1.bf16.msra.mxu0 0
  %1435 = vmatprep.subr.bf16.mxu0 0
  %1436 = vmatpush1.bf16.msra.mxu0 0
  %1437 = vmatprep.subr.bf16.mxu0 0
  %1438 = vmatpush1.bf16.msra.mxu0 0
  %1439 = vmatprep.subr.bf16.mxu0 0
  %1440 = vmatpush1.bf16.msra.mxu0 0
  %1441 = vmatprep.subr.bf16.mxu0 0
  %1442 = vmatpush1.bf16.msra.mxu0 0
  %1443 = vmatprep.mubr.bf16.mxu0 0
  %1444 = vmatmul.mubr.bf16.gmra.mrb[0].mxu0 %v1409
  %v1445 = vpop.f32.mrb[0].mxu0
  %v1446 = vadd.f32 %v1395, %v1445
  %v1447 = vpop.f32.mrb[0].mxu0
  %v1448 = vpop.f32.mrb[0].mxu0
  %v1449 = vadd.f32 %v1395, %v1448
  %v1450 = vpop.f32.mrb[0].mxu0
  %1451 = vdwg.mxu0
  %1452 = vst [vmem:[%s4] sm:$0xff] %v1446
  %1453 = vst [vmem:[%s4 + $0x8] sm:$0xff] %v1449
  // Predicated region
  $region18: #{bert_classifier_forward.1} parent=0 // pred_check
    _
  $region19: #{bert_classifier_forward.1} parent=0 // pred_check_branch
    %1455 = sbr.rel (0) target = $region21
  $region20: #{bert_classifier_forward.1} parent=0 // pred_region
    _
  $region21: #{bert_classifier_forward.1} parent=0 // pred_fallthru
    _
  // Predicated region
  $region22: #{bert_classifier_forward.1} parent=0 // pred_check
    _
  $region23: #{bert_classifier_forward.1} parent=0 // pred_check_branch
    %1457 = sbr.rel (0) target = $region25
  $region24: #{bert_classifier_forward.1} parent=0 // pred_region
    _
  $region25: #{bert_classifier_forward.1} parent=0 // pred_fallthru
    _

</llo_original>
